<compile_context>
chip_gen: v5e
topology: v5e:2x2
jax: 0.10.0
libtpu: 0.0.40
codegen_flags: <defaults>
</compile_context>

<pallas_src>
import math
from functools import partial

import jax
import jax.numpy as jnp
from jax.experimental import pallas as pl
from jax.experimental.pallas import tpu as pltpu


_NEG = -1e30   # large finite negative: avoids NaN for fully-masked (pad) query rows


# ----------------------------------------------------------------------------
# Fused whole-decoder kernel: one grid step = (batch element, layer)
# ----------------------------------------------------------------------------
def _layer_norm(h, g, b, eps):
    mu = jnp.mean(h, axis=-1, keepdims=True)
    var = jnp.mean(jnp.square(h - mu), axis=-1, keepdims=True)
    return (h - mu) * jax.lax.rsqrt(var + eps) * g + b


def _decoder_kernel(
    # inputs
    x_ref, enc_ref, pad_ref,
    sa_wqkv, sa_bqkv, sa_wo, sa_bo, ln1_g, ln1_b,
    ca_wq, ca_bq, ca_wkv, ca_bkv, ca_wo, ca_bo, ln2_g, ln2_b,
    ff_w1, ff_b1, ff_w2, ff_b2, ln3_g, ln3_b,
    # outputs
    xout_ref, attn_ref,
    # scratch
    x_sc,
    *, num_heads, head_dim, eps,
):
    H, dh = num_heads, head_dim
    E = H * dh
    L = x_ref.shape[1]
    bf16 = jnp.bfloat16
    layer = pl.program_id(1)

    # ---- carried activations: load embeddings once per batch element ----
    @pl.when(layer == 0)
    def _():
        x_sc[...] = x_ref[0]

    x = x_sc[...]                       # (L, E) f32, resident across the layer axis
    enc = enc_ref[0]                    # (S, E) f32, resident across the layer axis

    # ---- additive self-attn mask built in-kernel (no (B,L,L) HBM traffic) ----
    row = jax.lax.broadcasted_iota(jnp.int32, (L, L), 0)
    col = jax.lax.broadcasted_iota(jnp.int32, (L, L), 1)
    mask = jnp.where(col > row, _NEG, 0.0) + pad_ref[0]          # (L,L) + (1,L)

    # ---------------- self-attention (fused QKV; single deep out-proj) ----------------
    qkv = jnp.dot(x.astype(bf16), sa_wqkv[0],
                  preferred_element_type=jnp.float32) + sa_bqkv[0]        # (L, 3E) f32
    qkv = qkv.astype(bf16)
    ctxs = []
    for h in range(H):                       # H small -> unrolled; heads stay in VMEM
        q = qkv[:, h * dh:(h + 1) * dh]                          # 1/sqrt(dh) pre-folded
        k = qkv[:, E + h * dh:E + (h + 1) * dh]
        v = qkv[:, 2 * E + h * dh:2 * E + (h + 1) * dh]
        s = jax.lax.dot_general(q, k, (((1,), (1,)), ((), ())),
                                preferred_element_type=jnp.float32) + mask  # (L, L)
        m = jnp.max(s, axis=-1, keepdims=True)
        e = jnp.exp(s - m)
        p = e * pl.reciprocal(jnp.sum(e, axis=-1, keepdims=True), approx=True)
        ctxs.append(jnp.dot(p.astype(bf16), v, preferred_element_type=jnp.float32))
    ctx = jnp.concatenate(ctxs, axis=-1).astype(bf16)                      # (L, E)
    sa_out = jnp.dot(ctx, sa_wo[0], preferred_element_type=jnp.float32) + sa_bo[0]
    x = _layer_norm(x + sa_out, ln1_g[0], ln1_b[0], eps)

    # ---------------- cross-attention (fused KV; exact softmax for emitted weights) ----
    qc = (jnp.dot(x.astype(bf16), ca_wq[0],
                  preferred_element_type=jnp.float32) + ca_bq[0]).astype(bf16)   # (L, E)
    kvc = (jnp.dot(enc.astype(bf16), ca_wkv[0],
                   preferred_element_type=jnp.float32) + ca_bkv[0]).astype(bf16)  # (S, 2E)
    ctxs = []
    for h in range(H):
        q = qc[:, h * dh:(h + 1) * dh]
        k = kvc[:, h * dh:(h + 1) * dh]
        v = kvc[:, E + h * dh:E + (h + 1) * dh]
        s = jax.lax.dot_general(q, k, (((1,), (1,)), ((), ())),
                                preferred_element_type=jnp.float32)        # (L, S)
        m = jnp.max(s, axis=-1, keepdims=True)
        e = jnp.exp(s - m)
        p = e / jnp.sum(e, axis=-1, keepdims=True)    # exact: this is a module output
        attn_ref[0, h] = p.astype(attn_ref.dtype)
        ctxs.append(jnp.dot(p.astype(bf16), v, preferred_element_type=jnp.float32))
    ctx = jnp.concatenate(ctxs, axis=-1).astype(bf16)
    ca_out = jnp.dot(ctx, ca_wo[0], preferred_element_type=jnp.float32) + ca_bo[0]
    x = _layer_norm(x + ca_out, ln2_g[0], ln2_b[0], eps)

    # ---------------- FFN (hidden activation never leaves VMEM) ----------------
    h1 = jnp.dot(x.astype(bf16), ff_w1[0],
                 preferred_element_type=jnp.float32) + ff_b1[0]
    h1 = jnp.maximum(h1, 0.0)
    h2 = jnp.dot(h1.astype(bf16), ff_w2[0],
                 preferred_element_type=jnp.float32) + ff_b2[0]
    x = _layer_norm(x + h2, ln3_g[0], ln3_b[0], eps)

    # carry to next layer; output block stays VMEM-resident, written to HBM once per b
    x_sc[...] = x
    xout_ref[0] = x.astype(xout_ref.dtype)


# ----------------------------------------------------------------------------
# Decoder forward
# ----------------------------------------------------------------------------
def decoder_forward(tgt_cptn, src_img, params, *, pad_id, num_heads):
    """tgt_cptn: (B, L) int32, src_img: (S, B, E) f32.
    Returns output (L, B, E) and attn_all (num_layers, B, H, L, S)."""
    B, L = tgt_cptn.shape
    S, _, E = src_img.shape
    lp = params["layers"]
    NL = lp["sa_wqkv"].shape[0]
    F = lp["ff_w1"].shape[2]
    H = num_heads
    dh = E // H

    # TODO(synk): embedding gather, positional table add and the two boundary
    # transposes stay in XLA glue (a scalar-prefetch DMA-gather kernel is overkill).
    x = params["emb"][tgt_cptn] + params["pos_enc"][:L][None, :, :]        # (B, L, E)
    enc = jnp.transpose(src_img, (1, 0, 2))                                # (B, S, E)
    # only the key-padding additive row is streamed in; causal part built in-kernel
    pad_add = jnp.where(tgt_cptn == pad_id, _NEG, 0.0).astype(jnp.float32)[:, None, :]

    kernel = partial(_decoder_kernel, num_heads=H, head_dim=dh, eps=1e-5)

    per_b = lambda s: pl.BlockSpec(s, lambda b, l: (b, 0, 0))              # batch-indexed
    w = lambda r, c: pl.BlockSpec((1, r, c), lambda b, l: (l, 0, 0))       # layer-indexed

    x_out, attn = pl.pallas_call(
        kernel,
        grid=(B, NL),
        in_specs=[
            per_b((1, L, E)),                      # x (embeddings)
            per_b((1, S, E)),                      # encoder memory
            per_b((1, 1, L)),                      # key-padding additive row
            w(E, 3 * E), w(1, 3 * E),              # sa_wqkv, sa_bqkv
            w(E, E), w(1, E),                      # sa_wo, sa_bo
            w(1, E), w(1, E),                      # ln1_g, ln1_b
            w(E, E), w(1, E),                      # ca_wq, ca_bq
            w(E, 2 * E), w(1, 2 * E),              # ca_wkv, ca_bkv
            w(E, E), w(1, E),                      # ca_wo, ca_bo
            w(1, E), w(1, E),                      # ln2_g, ln2_b
            w(E, F), w(1, F),                      # ff_w1, ff_b1
            w(F, E), w(1, E),                      # ff_w2, ff_b2
            w(1, E), w(1, E),                      # ln3_g, ln3_b
        ],
        out_specs=[
            pl.BlockSpec((1, L, E), lambda b, l: (b, 0, 0)),         # final activations
            pl.BlockSpec((1, H, L, S), lambda b, l: (l, b, 0, 0)),   # per-layer attn
        ],
        out_shape=[
            jax.ShapeDtypeStruct((B, L, E), jnp.float32),
            jax.ShapeDtypeStruct((NL, B * H, L, S), jnp.float32),
        ],
        scratch_shapes=[pltpu.VMEM((L, E), jnp.float32)],            # carried activations
        compiler_params=pltpu.CompilerParams(
            dimension_semantics=("parallel", "arbitrary")),          # batch || , layer seq
    )(x, enc, pad_add,
      lp["sa_wqkv"], lp["sa_bqkv"], lp["sa_wo"], lp["sa_bo"], lp["ln1_g"], lp["ln1_b"],
      lp["ca_wq"], lp["ca_bq"], lp["ca_wkv"], lp["ca_bkv"], lp["ca_wo"], lp["ca_bo"],
      lp["ln2_g"], lp["ln2_b"],
      lp["ff_w1"], lp["ff_b1"], lp["ff_w2"], lp["ff_b2"], lp["ln3_g"], lp["ln3_b"])

    out = jnp.transpose(x_out, (1, 0, 2))                            # (L, B, E)
    return out, attn.reshape(NL, B, H, L, S)


# ----------------------------------------------------------------------------
# Deterministic parameter construction (packed / fused / layer-stacked layouts)
# ----------------------------------------------------------------------------
def _uniform(key, shape, scale):
    return jax.random.uniform(key, shape, jnp.float32, -scale, scale)


def init_layer_params(key, E, H, F):
    dh = E // H
    q_scale = 1.0 / math.sqrt(dh)          # folded into Q projection (offline transform)
    ks = jax.random.split(key, 7)
    s = 1.0 / math.sqrt(E)
    wdt = jnp.bfloat16                     # MXU-native storage; f32 accumulation in-kernel

    wqkv = _uniform(ks[0], (E, 3 * E), s)
    wqkv = wqkv.at[:, :E].multiply(q_scale)
    bqkv = jnp.zeros((1, 3 * E), jnp.float32)
    bqkv = bqkv.at[:, :E].multiply(q_scale)
    ca_wq = _uniform(ks[2], (E, E), s) * q_scale

    return {
        "sa_wqkv": wqkv.astype(wdt), "sa_bqkv": bqkv,
        "sa_wo": _uniform(ks[1], (E, E), s).astype(wdt),
        "sa_bo": jnp.zeros((1, E), jnp.float32),
        "ln1_g": jnp.ones((1, E), jnp.float32), "ln1_b": jnp.zeros((1, E), jnp.float32),
        "ca_wq": ca_wq.astype(wdt),
        "ca_bq": jnp.zeros((1, E), jnp.float32),
        "ca_wkv": _uniform(ks[3], (E, 2 * E), s).astype(wdt),
        "ca_bkv": jnp.zeros((1, 2 * E), jnp.float32),
        "ca_wo": _uniform(ks[4], (E, E), s).astype(wdt),
        "ca_bo": jnp.zeros((1, E), jnp.float32),
        "ln2_g": jnp.ones((1, E), jnp.float32), "ln2_b": jnp.zeros((1, E), jnp.float32),
        "ff_w1": _uniform(ks[5], (E, F), 1.0 / math.sqrt(E)).astype(wdt),
        "ff_b1": jnp.zeros((1, F), jnp.float32),
        "ff_w2": _uniform(ks[6], (F, E), 1.0 / math.sqrt(F)).astype(wdt),
        "ff_b2": jnp.zeros((1, E), jnp.float32),
        "ln3_g": jnp.ones((1, E), jnp.float32), "ln3_b": jnp.zeros((1, E), jnp.float32),
    }


def make_positional_encoding(max_len, d_model):
    pos = jnp.arange(max_len, dtype=jnp.float32)[:, None]
    div = jnp.exp(jnp.arange(0, d_model, 2, dtype=jnp.float32)
                  * (-math.log(10000.0) / d_model))
    pe = jnp.zeros((max_len, d_model), jnp.float32)
    pe = pe.at[:, 0::2].set(jnp.sin(pos * div))
    pe = pe.at[:, 1::2].set(jnp.cos(pos * div))
    return pe


def init_decoder_params(key, vocab_size, d_model, num_heads, num_layers,
                        max_len, ff_dim, pad_id):
    ks = jax.random.split(key, num_layers + 1)
    emb = 0.02 * jax.random.normal(ks[0], (vocab_size, d_model), jnp.float32)
    emb = emb.at[pad_id].set(0.0)                     # nn.Embedding padding_idx semantics
    per_layer = [init_layer_params(ks[i + 1], d_model, num_heads, ff_dim)
                 for i in range(num_layers)]
    # stack per-layer params on a leading axis -> selected by the layer grid index
    layers = jax.tree_util.tree_map(lambda *xs: jnp.stack(xs, 0), *per_layer)
    return {"emb": emb, "pos_enc": make_positional_encoding(max_len, d_model),
            "layers": layers}


# ----------------------------------------------------------------------------
# main
# ----------------------------------------------------------------------------
if __name__ == "__main__":
    vocab_size = 50
    d_model = 32
    num_heads = 4
    ff_dim = 64
    num_layers = 2
    max_len = 8              # tgt_cptn has max_len - 1 = 7 tokens
    pad_id = 0
    B = 2
    L = max_len - 1
    S = 16                   # encode_size^2 = 4*4

    key = jax.random.PRNGKey(0)
    k_par, k_tok, k_img = jax.random.split(key, 3)

    params = init_decoder_params(k_par, vocab_size, d_model, num_heads,
                                 num_layers, max_len, ff_dim, pad_id)

    tgt_cptn = jax.random.randint(k_tok, (B, L), 1, vocab_size, dtype=jnp.int32)
    tgt_cptn = tgt_cptn.at[0, -2:].set(pad_id)          # some pad tokens in batch 0

    src_img = jax.random.normal(k_img, (S, B, d_model), jnp.float32)

    fwd = jax.jit(partial(decoder_forward, pad_id=pad_id, num_heads=num_heads))
    output, attn_all = fwd(tgt_cptn, src_img, params)
    jax.block_until_ready((output, attn_all))

    assert output.shape == (L, B, d_model)
    assert attn_all.shape == (num_layers, B, num_heads, L, S)
    assert bool(jnp.all(jnp.isfinite(output)))
    assert bool(jnp.all(jnp.isfinite(attn_all)))
    # cross-attn weights use an exact softmax -> rows sum to 1
    assert bool(jnp.allclose(jnp.sum(attn_all, axis=-1), 1.0, atol=1e-3))

    print("KERNEL_OK")
</pallas_src>

<mosaic_0001>
module attributes {stable_mosaic.version = 11 : i64} {
  func.func @_decoder_kernel(%arg0: i32, %arg1: i32, %arg2: memref<1x7x32xf32, #tpu.memory_space<vmem>>, %arg3: memref<1x16x32xf32, #tpu.memory_space<vmem>>, %arg4: memref<1x1x7xf32, #tpu.memory_space<vmem>>, %arg5: memref<1x32x96xbf16, #tpu.memory_space<vmem>>, %arg6: memref<1x1x96xf32, #tpu.memory_space<vmem>>, %arg7: memref<1x32x32xbf16, #tpu.memory_space<vmem>>, %arg8: memref<1x1x32xf32, #tpu.memory_space<vmem>>, %arg9: memref<1x1x32xf32, #tpu.memory_space<vmem>>, %arg10: memref<1x1x32xf32, #tpu.memory_space<vmem>>, %arg11: memref<1x32x32xbf16, #tpu.memory_space<vmem>>, %arg12: memref<1x1x32xf32, #tpu.memory_space<vmem>>, %arg13: memref<1x32x64xbf16, #tpu.memory_space<vmem>>, %arg14: memref<1x1x64xf32, #tpu.memory_space<vmem>>, %arg15: memref<1x32x32xbf16, #tpu.memory_space<vmem>>, %arg16: memref<1x1x32xf32, #tpu.memory_space<vmem>>, %arg17: memref<1x1x32xf32, #tpu.memory_space<vmem>>, %arg18: memref<1x1x32xf32, #tpu.memory_space<vmem>>, %arg19: memref<1x32x64xbf16, #tpu.memory_space<vmem>>, %arg20: memref<1x1x64xf32, #tpu.memory_space<vmem>>, %arg21: memref<1x64x32xbf16, #tpu.memory_space<vmem>>, %arg22: memref<1x1x32xf32, #tpu.memory_space<vmem>>, %arg23: memref<1x1x32xf32, #tpu.memory_space<vmem>>, %arg24: memref<1x1x32xf32, #tpu.memory_space<vmem>>, %arg25: memref<1x7x32xf32, #tpu.memory_space<vmem>>, %arg26: memref<1x4x7x16xf32, #tpu.memory_space<vmem>>, %arg27: memref<7x32xf32, #tpu.memory_space<vmem>>) attributes {dimension_semantics = [#tpu.dimension_semantics<parallel>, #tpu.dimension_semantics<arbitrary>], iteration_bounds = array<i64: 2, 2>, scalar_prefetch = 0 : i64, scratch_operands = 1 : i64, tpu.core_type = #tpu.core_type<tc>, window_params = [{transform_indices = @transform_0, window_bounds = array<i64: 1, 7, 32>}, {transform_indices = @transform_1, window_bounds = array<i64: 1, 16, 32>}, {transform_indices = @transform_2, window_bounds = array<i64: 1, 1, 7>}, {transform_indices = @transform_3, window_bounds = array<i64: 1, 32, 96>}, {transform_indices = @transform_4, window_bounds = array<i64: 1, 1, 96>}, {transform_indices = @transform_5, window_bounds = array<i64: 1, 32, 32>}, {transform_indices = @transform_6, window_bounds = array<i64: 1, 1, 32>}, {transform_indices = @transform_7, window_bounds = array<i64: 1, 1, 32>}, {transform_indices = @transform_8, window_bounds = array<i64: 1, 1, 32>}, {transform_indices = @transform_9, window_bounds = array<i64: 1, 32, 32>}, {transform_indices = @transform_10, window_bounds = array<i64: 1, 1, 32>}, {transform_indices = @transform_11, window_bounds = array<i64: 1, 32, 64>}, {transform_indices = @transform_12, window_bounds = array<i64: 1, 1, 64>}, {transform_indices = @transform_13, window_bounds = array<i64: 1, 32, 32>}, {transform_indices = @transform_14, window_bounds = array<i64: 1, 1, 32>}, {transform_indices = @transform_15, window_bounds = array<i64: 1, 1, 32>}, {transform_indices = @transform_16, window_bounds = array<i64: 1, 1, 32>}, {transform_indices = @transform_17, window_bounds = array<i64: 1, 32, 64>}, {transform_indices = @transform_18, window_bounds = array<i64: 1, 1, 64>}, {transform_indices = @transform_19, window_bounds = array<i64: 1, 64, 32>}, {transform_indices = @transform_20, window_bounds = array<i64: 1, 1, 32>}, {transform_indices = @transform_21, window_bounds = array<i64: 1, 1, 32>}, {transform_indices = @transform_22, window_bounds = array<i64: 1, 1, 32>}, {transform_indices = @transform_23, window_bounds = array<i64: 1, 7, 32>}, {transform_indices = @transform_24, window_bounds = array<i64: 1, 4, 7, 16>}]} {
    %c0_i32 = arith.constant 0 : i32
    %0 = arith.cmpi eq, %arg1, %c0_i32 : i32
    %1 = arith.extui %0 : i1 to i32
    %c0_i32_0 = arith.constant 0 : i32
    %2 = arith.cmpi ne, %1, %c0_i32_0 : i32
    scf.if %2 {
      %c0_142 = arith.constant 0 : index
      %c0_143 = arith.constant 0 : index
      %c0_144 = arith.constant 0 : index
      %304 = vector.load %arg2[%c0_142, %c0_143, %c0_144] : memref<1x7x32xf32, #tpu.memory_space<vmem>>, vector<1x7x32xf32>
      %305 = vector.shape_cast %304 : vector<1x7x32xf32> to vector<7x32xf32>
      %c0_145 = arith.constant 0 : index
      %c0_146 = arith.constant 0 : index
      %306 = vector.load %arg27[%c0_145, %c0_146] : memref<7x32xf32, #tpu.memory_space<vmem>>, vector<7x32xf32>
      tpu.vector_store %arg27[%c0_145, %c0_146], %305 {strides = array<i32>} : memref<7x32xf32, #tpu.memory_space<vmem>>, vector<7x32xf32>,
    } else {
    }
    %c0 = arith.constant 0 : index
    %c0_1 = arith.constant 0 : index
    %3 = vector.load %arg27[%c0, %c0_1] : memref<7x32xf32, #tpu.memory_space<vmem>>, vector<7x32xf32>
    %c0_2 = arith.constant 0 : index
    %c0_3 = arith.constant 0 : index
    %c0_4 = arith.constant 0 : index
    %4 = vector.load %arg3[%c0_2, %c0_3, %c0_4] : memref<1x16x32xf32, #tpu.memory_space<vmem>>, vector<1x16x32xf32>
    %5 = vector.shape_cast %4 : vector<1x16x32xf32> to vector<16x32xf32>
    %6 = tpu.iota {dimensions = array<i32: 0>} : vector<7x7xi32>
    %7 = tpu.iota {dimensions = array<i32: 1>} : vector<7x7xi32>
    %8 = arith.cmpi sgt, %7, %6 : vector<7x7xi32>
    %cst = arith.constant -1.000000e+30 : f32
    %cst_5 = arith.constant 0.000000e+00 : f32
    %9 = vector.broadcast %cst : f32 to vector<7x7xf32>
    %10 = vector.broadcast %cst_5 : f32 to vector<7x7xf32>
    %11 = arith.select %8, %9, %10 : vector<7x7xi1>, vector<7x7xf32>
    %c0_6 = arith.constant 0 : index
    %c0_7 = arith.constant 0 : index
    %c0_8 = arith.constant 0 : index
    %12 = vector.load %arg4[%c0_6, %c0_7, %c0_8] : memref<1x1x7xf32, #tpu.memory_space<vmem>>, vector<1x1x7xf32>
    %13 = vector.shape_cast %12 : vector<1x1x7xf32> to vector<1x7xf32>
    %14 = vector.broadcast %13 : vector<1x7xf32> to vector<7x7xf32>
    %15 = arith.addf %11, %14 : vector<7x7xf32>
    %16 = arith.truncf %3 : vector<7x32xf32> to vector<7x32xbf16>
    %c0_9 = arith.constant 0 : index
    %c0_10 = arith.constant 0 : index
    %c0_11 = arith.constant 0 : index
    %17 = vector.load %arg5[%c0_9, %c0_10, %c0_11] : memref<1x32x96xbf16, #tpu.memory_space<vmem>>, vector<1x32x96xbf16>
    %18 = vector.shape_cast %17 : vector<1x32x96xbf16> to vector<32x96xbf16>
    %cst_12 = arith.constant dense<0.000000e+00> : vector<7x96xf32>
    %19 = tpu.matmul %16, %18, %cst_12 {dimension_numbers = #tpu.dot_dimension_numbers<[1], [0], [0], [1], [0, 0, 1, 1], [], []>} : vector<7x32xbf16>, vector<32x96xbf16>, vector<7x96xf32> -> vector<7x96xf32>
    %c0_13 = arith.constant 0 : index
    %c0_14 = arith.constant 0 : index
    %c0_15 = arith.constant 0 : index
    %20 = vector.load %arg6[%c0_13, %c0_14, %c0_15] : memref<1x1x96xf32, #tpu.memory_space<vmem>>, vector<1x1x96xf32>
    %21 = vector.shape_cast %20 : vector<1x1x96xf32> to vector<1x96xf32>
    %22 = vector.broadcast %21 : vector<1x96xf32> to vector<7x96xf32>
    %23 = arith.addf %19, %22 : vector<7x96xf32>
    %24 = arith.truncf %23 : vector<7x96xf32> to vector<7x96xbf16>
    %25 = vector.extract_strided_slice %24 {offsets = [0, 0], sizes = [7, 8], strides = [1, 1]} : vector<7x96xbf16> to vector<7x8xbf16>
    %26 = vector.extract_strided_slice %24 {offsets = [0, 32], sizes = [7, 8], strides = [1, 1]} : vector<7x96xbf16> to vector<7x8xbf16>
    %27 = vector.extract_strided_slice %24 {offsets = [0, 64], sizes = [7, 8], strides = [1, 1]} : vector<7x96xbf16> to vector<7x8xbf16>
    %cst_16 = arith.constant dense<0.000000e+00> : vector<7x7xf32>
    %28 = tpu.matmul %25, %26, %cst_16 {dimension_numbers = #tpu.dot_dimension_numbers<[1], [1], [0], [0], [0, 0, 1, 0], [], []>} : vector<7x8xbf16>, vector<7x8xbf16>, vector<7x7xf32> -> vector<7x7xf32>
    %29 = arith.addf %28, %15 : vector<7x7xf32>
    %cst_17 = arith.constant dense<0xFF800000> : vector<7xf32>
    %30 = vector.multi_reduction <maximumf>, %29, %cst_17 [1] : vector<7x7xf32> to vector<7xf32>
    %31 = vector.shape_cast %30 : vector<7xf32> to vector<7x1xf32>
    %32 = vector.broadcast %31 : vector<7x1xf32> to vector<7x7xf32>
    %33 = arith.subf %29, %32 : vector<7x7xf32>
    %34 = math.exp %33 : vector<7x7xf32>
    %cst_18 = arith.constant dense<0.000000e+00> : vector<7xf32>
    %35 = vector.multi_reduction <add>, %34, %cst_18 [1] : vector<7x7xf32> to vector<7xf32>
    %36 = vector.shape_cast %35 : vector<7xf32> to vector<7x1xf32>
    %37 = tpu.reciprocal %36 {approx = true} : vector<7x1xf32> -> vector<7x1xf32>
    %38 = vector.broadcast %37 : vector<7x1xf32> to vector<7x7xf32>
    %39 = arith.mulf %34, %38 : vector<7x7xf32>
    %40 = arith.truncf %39 : vector<7x7xf32> to vector<7x7xbf16>
    %cst_19 = arith.constant dense<0.000000e+00> : vector<7x8xf32>
    %41 = tpu.matmul %40, %27, %cst_19 {dimension_numbers = #tpu.dot_dimension_numbers<[1], [0], [0], [1], [0, 0, 1, 1], [], []>} : vector<7x7xbf16>, vector<7x8xbf16>, vector<7x8xf32> -> vector<7x8xf32>
    %42 = vector.extract_strided_slice %24 {offsets = [0, 8], sizes = [7, 8], strides = [1, 1]} : vector<7x96xbf16> to vector<7x8xbf16>
    %43 = vector.extract_strided_slice %24 {offsets = [0, 40], sizes = [7, 8], strides = [1, 1]} : vector<7x96xbf16> to vector<7x8xbf16>
    %44 = vector.extract_strided_slice %24 {offsets = [0, 72], sizes = [7, 8], strides = [1, 1]} : vector<7x96xbf16> to vector<7x8xbf16>
    %cst_20 = arith.constant dense<0.000000e+00> : vector<7x7xf32>
    %45 = tpu.matmul %42, %43, %cst_20 {dimension_numbers = #tpu.dot_dimension_numbers<[1], [1], [0], [0], [0, 0, 1, 0], [], []>} : vector<7x8xbf16>, vector<7x8xbf16>, vector<7x7xf32> -> vector<7x7xf32>
    %46 = arith.addf %45, %15 : vector<7x7xf32>
    %cst_21 = arith.constant dense<0xFF800000> : vector<7xf32>
    %47 = vector.multi_reduction <maximumf>, %46, %cst_21 [1] : vector<7x7xf32> to vector<7xf32>
    %48 = vector.shape_cast %47 : vector<7xf32> to vector<7x1xf32>
    %49 = vector.broadcast %48 : vector<7x1xf32> to vector<7x7xf32>
    %50 = arith.subf %46, %49 : vector<7x7xf32>
    %51 = math.exp %50 : vector<7x7xf32>
    %cst_22 = arith.constant dense<0.000000e+00> : vector<7xf32>
    %52 = vector.multi_reduction <add>, %51, %cst_22 [1] : vector<7x7xf32> to vector<7xf32>
    %53 = vector.shape_cast %52 : vector<7xf32> to vector<7x1xf32>
    %54 = tpu.reciprocal %53 {approx = true} : vector<7x1xf32> -> vector<7x1xf32>
    %55 = vector.broadcast %54 : vector<7x1xf32> to vector<7x7xf32>
    %56 = arith.mulf %51, %55 : vector<7x7xf32>
    %57 = arith.truncf %56 : vector<7x7xf32> to vector<7x7xbf16>
    %cst_23 = arith.constant dense<0.000000e+00> : vector<7x8xf32>
    %58 = tpu.matmul %57, %44, %cst_23 {dimension_numbers = #tpu.dot_dimension_numbers<[1], [0], [0], [1], [0, 0, 1, 1], [], []>} : vector<7x7xbf16>, vector<7x8xbf16>, vector<7x8xf32> -> vector<7x8xf32>
    %59 = vector.extract_strided_slice %24 {offsets = [0, 16], sizes = [7, 8], strides = [1, 1]} : vector<7x96xbf16> to vector<7x8xbf16>
    %60 = vector.extract_strided_slice %24 {offsets = [0, 48], sizes = [7, 8], strides = [1, 1]} : vector<7x96xbf16> to vector<7x8xbf16>
    %61 = vector.extract_strided_slice %24 {offsets = [0, 80], sizes = [7, 8], strides = [1, 1]} : vector<7x96xbf16> to vector<7x8xbf16>
    %cst_24 = arith.constant dense<0.000000e+00> : vector<7x7xf32>
    %62 = tpu.matmul %59, %60, %cst_24 {dimension_numbers = #tpu.dot_dimension_numbers<[1], [1], [0], [0], [0, 0, 1, 0], [], []>} : vector<7x8xbf16>, vector<7x8xbf16>, vector<7x7xf32> -> vector<7x7xf32>
    %63 = arith.addf %62, %15 : vector<7x7xf32>
    %cst_25 = arith.constant dense<0xFF800000> : vector<7xf32>
    %64 = vector.multi_reduction <maximumf>, %63, %cst_25 [1] : vector<7x7xf32> to vector<7xf32>
    %65 = vector.shape_cast %64 : vector<7xf32> to vector<7x1xf32>
    %66 = vector.broadcast %65 : vector<7x1xf32> to vector<7x7xf32>
    %67 = arith.subf %63, %66 : vector<7x7xf32>
    %68 = math.exp %67 : vector<7x7xf32>
    %cst_26 = arith.constant dense<0.000000e+00> : vector<7xf32>
    %69 = vector.multi_reduction <add>, %68, %cst_26 [1] : vector<7x7xf32> to vector<7xf32>
    %70 = vector.shape_cast %69 : vector<7xf32> to vector<7x1xf32>
    %71 = tpu.reciprocal %70 {approx = true} : vector<7x1xf32> -> vector<7x1xf32>
    %72 = vector.broadcast %71 : vector<7x1xf32> to vector<7x7xf32>
    %73 = arith.mulf %68, %72 : vector<7x7xf32>
    %74 = arith.truncf %73 : vector<7x7xf32> to vector<7x7xbf16>
    %cst_27 = arith.constant dense<0.000000e+00> : vector<7x8xf32>
    %75 = tpu.matmul %74, %61, %cst_27 {dimension_numbers = #tpu.dot_dimension_numbers<[1], [0], [0], [1], [0, 0, 1, 1], [], []>} : vector<7x7xbf16>, vector<7x8xbf16>, vector<7x8xf32> -> vector<7x8xf32>
    %76 = vector.extract_strided_slice %24 {offsets = [0, 24], sizes = [7, 8], strides = [1, 1]} : vector<7x96xbf16> to vector<7x8xbf16>
    %77 = vector.extract_strided_slice %24 {offsets = [0, 56], sizes = [7, 8], strides = [1, 1]} : vector<7x96xbf16> to vector<7x8xbf16>
    %78 = vector.extract_strided_slice %24 {offsets = [0, 88], sizes = [7, 8], strides = [1, 1]} : vector<7x96xbf16> to vector<7x8xbf16>
    %cst_28 = arith.constant dense<0.000000e+00> : vector<7x7xf32>
    %79 = tpu.matmul %76, %77, %cst_28 {dimension_numbers = #tpu.dot_dimension_numbers<[1], [1], [0], [0], [0, 0, 1, 0], [], []>} : vector<7x8xbf16>, vector<7x8xbf16>, vector<7x7xf32> -> vector<7x7xf32>
    %80 = arith.addf %79, %15 : vector<7x7xf32>
    %cst_29 = arith.constant dense<0xFF800000> : vector<7xf32>
    %81 = vector.multi_reduction <maximumf>, %80, %cst_29 [1] : vector<7x7xf32> to vector<7xf32>
    %82 = vector.shape_cast %81 : vector<7xf32> to vector<7x1xf32>
    %83 = vector.broadcast %82 : vector<7x1xf32> to vector<7x7xf32>
    %84 = arith.subf %80, %83 : vector<7x7xf32>
    %85 = math.exp %84 : vector<7x7xf32>
    %cst_30 = arith.constant dense<0.000000e+00> : vector<7xf32>
    %86 = vector.multi_reduction <add>, %85, %cst_30 [1] : vector<7x7xf32> to vector<7xf32>
    %87 = vector.shape_cast %86 : vector<7xf32> to vector<7x1xf32>
    %88 = tpu.reciprocal %87 {approx = true} : vector<7x1xf32> -> vector<7x1xf32>
    %89 = vector.broadcast %88 : vector<7x1xf32> to vector<7x7xf32>
    %90 = arith.mulf %85, %89 : vector<7x7xf32>
    %91 = arith.truncf %90 : vector<7x7xf32> to vector<7x7xbf16>
    %cst_31 = arith.constant dense<0.000000e+00> : vector<7x8xf32>
    %92 = tpu.matmul %91, %78, %cst_31 {dimension_numbers = #tpu.dot_dimension_numbers<[1], [0], [0], [1], [0, 0, 1, 1], [], []>} : vector<7x7xbf16>, vector<7x8xbf16>, vector<7x8xf32> -> vector<7x8xf32>
    %93 = tpu.concatenate %41, %58, %75, %92 in 1 : vector<7x8xf32>, vector<7x8xf32>, vector<7x8xf32>, vector<7x8xf32> -> vector<7x32xf32>
    %94 = arith.truncf %93 : vector<7x32xf32> to vector<7x32xbf16>
    %c0_32 = arith.constant 0 : index
    %c0_33 = arith.constant 0 : index
    %c0_34 = arith.constant 0 : index
    %95 = vector.load %arg7[%c0_32, %c0_33, %c0_34] : memref<1x32x32xbf16, #tpu.memory_space<vmem>>, vector<1x32x32xbf16>
    %96 = vector.shape_cast %95 : vector<1x32x32xbf16> to vector<32x32xbf16>
    %cst_35 = arith.constant dense<0.000000e+00> : vector<7x32xf32>
    %97 = tpu.matmul %94, %96, %cst_35 {dimension_numbers = #tpu.dot_dimension_numbers<[1], [0], [0], [1], [0, 0, 1, 1], [], []>} : vector<7x32xbf16>, vector<32x32xbf16>, vector<7x32xf32> -> vector<7x32xf32>
    %c0_36 = arith.constant 0 : index
    %c0_37 = arith.constant 0 : index
    %c0_38 = arith.constant 0 : index
    %98 = vector.load %arg8[%c0_36, %c0_37, %c0_38] : memref<1x1x32xf32, #tpu.memory_space<vmem>>, vector<1x1x32xf32>
    %99 = vector.shape_cast %98 : vector<1x1x32xf32> to vector<1x32xf32>
    %100 = vector.broadcast %99 : vector<1x32xf32> to vector<7x32xf32>
    %101 = arith.addf %97, %100 : vector<7x32xf32>
    %102 = arith.addf %3, %101 : vector<7x32xf32>
    %c0_39 = arith.constant 0 : index
    %c0_40 = arith.constant 0 : index
    %c0_41 = arith.constant 0 : index
    %103 = vector.load %arg9[%c0_39, %c0_40, %c0_41] : memref<1x1x32xf32, #tpu.memory_space<vmem>>, vector<1x1x32xf32>
    %104 = vector.shape_cast %103 : vector<1x1x32xf32> to vector<1x32xf32>
    %c0_42 = arith.constant 0 : index
    %c0_43 = arith.constant 0 : index
    %c0_44 = arith.constant 0 : index
    %105 = vector.load %arg10[%c0_42, %c0_43, %c0_44] : memref<1x1x32xf32, #tpu.memory_space<vmem>>, vector<1x1x32xf32>
    %106 = vector.shape_cast %105 : vector<1x1x32xf32> to vector<1x32xf32>
    %cst_45 = arith.constant dense<0.000000e+00> : vector<7xf32>
    %107 = vector.multi_reduction <add>, %102, %cst_45 [1] : vector<7x32xf32> to vector<7xf32>
    %108 = vector.shape_cast %107 : vector<7xf32> to vector<7x1xf32>
    %cst_46 = arith.constant 3.200000e+01 : f32
    %109 = vector.broadcast %cst_46 : f32 to vector<7x1xf32>
    %110 = arith.divf %108, %109 : vector<7x1xf32>
    %111 = vector.broadcast %110 : vector<7x1xf32> to vector<7x32xf32>
    %112 = arith.subf %102, %111 : vector<7x32xf32>
    %113 = arith.mulf %112, %112 : vector<7x32xf32>
    %cst_47 = arith.constant dense<0.000000e+00> : vector<7xf32>
    %114 = vector.multi_reduction <add>, %113, %cst_47 [1] : vector<7x32xf32> to vector<7xf32>
    %115 = vector.shape_cast %114 : vector<7xf32> to vector<7x1xf32>
    %cst_48 = arith.constant 3.200000e+01 : f32
    %116 = vector.broadcast %cst_48 : f32 to vector<7x1xf32>
    %117 = arith.divf %115, %116 : vector<7x1xf32>
    %118 = vector.broadcast %110 : vector<7x1xf32> to vector<7x32xf32>
    %119 = arith.subf %102, %118 : vector<7x32xf32>
    %cst_49 = arith.constant 9.99999974E-6 : f32
    %120 = vector.broadcast %cst_49 : f32 to vector<7x1xf32>
    %121 = arith.addf %117, %120 : vector<7x1xf32>
    %122 = math.rsqrt %121 : vector<7x1xf32>
    %123 = vector.broadcast %122 : vector<7x1xf32> to vector<7x32xf32>
    %124 = arith.mulf %119, %123 : vector<7x32xf32>
    %125 = vector.broadcast %104 : vector<1x32xf32> to vector<7x32xf32>
    %126 = arith.mulf %124, %125 : vector<7x32xf32>
    %127 = vector.broadcast %106 : vector<1x32xf32> to vector<7x32xf32>
    %128 = arith.addf %126, %127 : vector<7x32xf32>
    %129 = arith.truncf %128 : vector<7x32xf32> to vector<7x32xbf16>
    %c0_50 = arith.constant 0 : index
    %c0_51 = arith.constant 0 : index
    %c0_52 = arith.constant 0 : index
    %130 = vector.load %arg11[%c0_50, %c0_51, %c0_52] : memref<1x32x32xbf16, #tpu.memory_space<vmem>>, vector<1x32x32xbf16>
    %131 = vector.shape_cast %130 : vector<1x32x32xbf16> to vector<32x32xbf16>
    %cst_53 = arith.constant dense<0.000000e+00> : vector<7x32xf32>
    %132 = tpu.matmul %129, %131, %cst_53 {dimension_numbers = #tpu.dot_dimension_numbers<[1], [0], [0], [1], [0, 0, 1, 1], [], []>} : vector<7x32xbf16>, vector<32x32xbf16>, vector<7x32xf32> -> vector<7x32xf32>
    %c0_54 = arith.constant 0 : index
    %c0_55 = arith.constant 0 : index
    %c0_56 = arith.constant 0 : index
    %133 = vector.load %arg12[%c0_54, %c0_55, %c0_56] : memref<1x1x32xf32, #tpu.memory_space<vmem>>, vector<1x1x32xf32>
    %134 = vector.shape_cast %133 : vector<1x1x32xf32> to vector<1x32xf32>
    %135 = vector.broadcast %134 : vector<1x32xf32> to vector<7x32xf32>
    %136 = arith.addf %132, %135 : vector<7x32xf32>
    %137 = arith.truncf %136 : vector<7x32xf32> to vector<7x32xbf16>
    %138 = arith.truncf %5 : vector<16x32xf32> to vector<16x32xbf16>
    %c0_57 = arith.constant 0 : index
    %c0_58 = arith.constant 0 : index
    %c0_59 = arith.constant 0 : index
    %139 = vector.load %arg13[%c0_57, %c0_58, %c0_59] : memref<1x32x64xbf16, #tpu.memory_space<vmem>>, vector<1x32x64xbf16>
    %140 = vector.shape_cast %139 : vector<1x32x64xbf16> to vector<32x64xbf16>
    %cst_60 = arith.constant dense<0.000000e+00> : vector<16x64xf32>
    %141 = tpu.matmul %138, %140, %cst_60 {dimension_numbers = #tpu.dot_dimension_numbers<[1], [0], [0], [1], [0, 0, 1, 1], [], []>} : vector<16x32xbf16>, vector<32x64xbf16>, vector<16x64xf32> -> vector<16x64xf32>
    %c0_61 = arith.constant 0 : index
    %c0_62 = arith.constant 0 : index
    %c0_63 = arith.constant 0 : index
    %142 = vector.load %arg14[%c0_61, %c0_62, %c0_63] : memref<1x1x64xf32, #tpu.memory_space<vmem>>, vector<1x1x64xf32>
    %143 = vector.shape_cast %142 : vector<1x1x64xf32> to vector<1x64xf32>
    %144 = vector.broadcast %143 : vector<1x64xf32> to vector<16x64xf32>
    %145 = arith.addf %141, %144 : vector<16x64xf32>
    %146 = arith.truncf %145 : vector<16x64xf32> to vector<16x64xbf16>
    %147 = vector.extract_strided_slice %137 {offsets = [0, 0], sizes = [7, 8], strides = [1, 1]} : vector<7x32xbf16> to vector<7x8xbf16>
    %148 = vector.extract_strided_slice %146 {offsets = [0, 0], sizes = [16, 8], strides = [1, 1]} : vector<16x64xbf16> to vector<16x8xbf16>
    %149 = vector.extract_strided_slice %146 {offsets = [0, 32], sizes = [16, 8], strides = [1, 1]} : vector<16x64xbf16> to vector<16x8xbf16>
    %cst_64 = arith.constant dense<0.000000e+00> : vector<7x16xf32>
    %150 = tpu.matmul %147, %148, %cst_64 {dimension_numbers = #tpu.dot_dimension_numbers<[1], [1], [0], [0], [0, 0, 1, 0], [], []>} : vector<7x8xbf16>, vector<16x8xbf16>, vector<7x16xf32> -> vector<7x16xf32>
    %cst_65 = arith.constant dense<0xFF800000> : vector<7xf32>
    %151 = vector.multi_reduction <maximumf>, %150, %cst_65 [1] : vector<7x16xf32> to vector<7xf32>
    %152 = vector.shape_cast %151 : vector<7xf32> to vector<7x1xf32>
    %153 = vector.broadcast %152 : vector<7x1xf32> to vector<7x16xf32>
    %154 = arith.subf %150, %153 : vector<7x16xf32>
    %155 = math.exp %154 : vector<7x16xf32>
    %cst_66 = arith.constant dense<0.000000e+00> : vector<7xf32>
    %156 = vector.multi_reduction <add>, %155, %cst_66 [1] : vector<7x16xf32> to vector<7xf32>
    %157 = vector.shape_cast %156 : vector<7xf32> to vector<7x1xf32>
    %158 = vector.broadcast %157 : vector<7x1xf32> to vector<7x16xf32>
    %159 = arith.divf %155, %158 : vector<7x16xf32>
    %c0_67 = arith.constant 0 : index
    %c0_68 = arith.constant 0 : index
    %c0_69 = arith.constant 0 : index
    %c0_70 = arith.constant 0 : index
    %160 = vector.load %arg26[%c0_67, %c0_68, %c0_69, %c0_70] : memref<1x4x7x16xf32, #tpu.memory_space<vmem>>, vector<1x1x7x16xf32>
    %161 = vector.shape_cast %160 : vector<1x1x7x16xf32> to vector<7x16xf32>
    %162 = vector.shape_cast %159 : vector<7x16xf32> to vector<1x1x7x16xf32>
    tpu.vector_store %arg26[%c0_67, %c0_68, %c0_69, %c0_70], %162 {strides = array<i32>} : memref<1x4x7x16xf32, #tpu.memory_space<vmem>>, vector<1x1x7x16xf32>,
    %163 = arith.truncf %159 : vector<7x16xf32> to vector<7x16xbf16>
    %cst_71 = arith.constant dense<0.000000e+00> : vector<7x8xf32>
    %164 = tpu.matmul %163, %149, %cst_71 {dimension_numbers = #tpu.dot_dimension_numbers<[1], [0], [0], [1], [0, 0, 1, 1], [], []>} : vector<7x16xbf16>, vector<16x8xbf16>, vector<7x8xf32> -> vector<7x8xf32>
    %165 = vector.extract_strided_slice %137 {offsets = [0, 8], sizes = [7, 8], strides = [1, 1]} : vector<7x32xbf16> to vector<7x8xbf16>
    %166 = vector.extract_strided_slice %146 {offsets = [0, 8], sizes = [16, 8], strides = [1, 1]} : vector<16x64xbf16> to vector<16x8xbf16>
    %167 = vector.extract_strided_slice %146 {offsets = [0, 40], sizes = [16, 8], strides = [1, 1]} : vector<16x64xbf16> to vector<16x8xbf16>
    %cst_72 = arith.constant dense<0.000000e+00> : vector<7x16xf32>
    %168 = tpu.matmul %165, %166, %cst_72 {dimension_numbers = #tpu.dot_dimension_numbers<[1], [1], [0], [0], [0, 0, 1, 0], [], []>} : vector<7x8xbf16>, vector<16x8xbf16>, vector<7x16xf32> -> vector<7x16xf32>
    %cst_73 = arith.constant dense<0xFF800000> : vector<7xf32>
    %169 = vector.multi_reduction <maximumf>, %168, %cst_73 [1] : vector<7x16xf32> to vector<7xf32>
    %170 = vector.shape_cast %169 : vector<7xf32> to vector<7x1xf32>
    %171 = vector.broadcast %170 : vector<7x1xf32> to vector<7x16xf32>
    %172 = arith.subf %168, %171 : vector<7x16xf32>
    %173 = math.exp %172 : vector<7x16xf32>
    %cst_74 = arith.constant dense<0.000000e+00> : vector<7xf32>
    %174 = vector.multi_reduction <add>, %173, %cst_74 [1] : vector<7x16xf32> to vector<7xf32>
    %175 = vector.shape_cast %174 : vector<7xf32> to vector<7x1xf32>
    %176 = vector.broadcast %175 : vector<7x1xf32> to vector<7x16xf32>
    %177 = arith.divf %173, %176 : vector<7x16xf32>
    %c0_75 = arith.constant 0 : index
    %c1 = arith.constant 1 : index
    %c0_76 = arith.constant 0 : index
    %c0_77 = arith.constant 0 : index
    %178 = vector.load %arg26[%c0_75, %c1, %c0_76, %c0_77] : memref<1x4x7x16xf32, #tpu.memory_space<vmem>>, vector<1x1x7x16xf32>
    %179 = vector.shape_cast %178 : vector<1x1x7x16xf32> to vector<7x16xf32>
    %180 = vector.shape_cast %177 : vector<7x16xf32> to vector<1x1x7x16xf32>
    tpu.vector_store %arg26[%c0_75, %c1, %c0_76, %c0_77], %180 {strides = array<i32>} : memref<1x4x7x16xf32, #tpu.memory_space<vmem>>, vector<1x1x7x16xf32>,
    %181 = arith.truncf %177 : vector<7x16xf32> to vector<7x16xbf16>
    %cst_78 = arith.constant dense<0.000000e+00> : vector<7x8xf32>
    %182 = tpu.matmul %181, %167, %cst_78 {dimension_numbers = #tpu.dot_dimension_numbers<[1], [0], [0], [1], [0, 0, 1, 1], [], []>} : vector<7x16xbf16>, vector<16x8xbf16>, vector<7x8xf32> -> vector<7x8xf32>
    %183 = vector.extract_strided_slice %137 {offsets = [0, 16], sizes = [7, 8], strides = [1, 1]} : vector<7x32xbf16> to vector<7x8xbf16>
    %184 = vector.extract_strided_slice %146 {offsets = [0, 16], sizes = [16, 8], strides = [1, 1]} : vector<16x64xbf16> to vector<16x8xbf16>
    %185 = vector.extract_strided_slice %146 {offsets = [0, 48], sizes = [16, 8], strides = [1, 1]} : vector<16x64xbf16> to vector<16x8xbf16>
    %cst_79 = arith.constant dense<0.000000e+00> : vector<7x16xf32>
    %186 = tpu.matmul %183, %184, %cst_79 {dimension_numbers = #tpu.dot_dimension_numbers<[1], [1], [0], [0], [0, 0, 1, 0], [], []>} : vector<7x8xbf16>, vector<16x8xbf16>, vector<7x16xf32> -> vector<7x16xf32>
    %cst_80 = arith.constant dense<0xFF800000> : vector<7xf32>
    %187 = vector.multi_reduction <maximumf>, %186, %cst_80 [1] : vector<7x16xf32> to vector<7xf32>
    %188 = vector.shape_cast %187 : vector<7xf32> to vector<7x1xf32>
    %189 = vector.broadcast %188 : vector<7x1xf32> to vector<7x16xf32>
    %190 = arith.subf %186, %189 : vector<7x16xf32>
    %191 = math.exp %190 : vector<7x16xf32>
    %cst_81 = arith.constant dense<0.000000e+00> : vector<7xf32>
    %192 = vector.multi_reduction <add>, %191, %cst_81 [1] : vector<7x16xf32> to vector<7xf32>
    %193 = vector.shape_cast %192 : vector<7xf32> to vector<7x1xf32>
    %194 = vector.broadcast %193 : vector<7x1xf32> to vector<7x16xf32>
    %195 = arith.divf %191, %194 : vector<7x16xf32>
    %c0_82 = arith.constant 0 : index
    %c2 = arith.constant 2 : index
    %c0_83 = arith.constant 0 : index
    %c0_84 = arith.constant 0 : index
    %196 = vector.load %arg26[%c0_82, %c2, %c0_83, %c0_84] : memref<1x4x7x16xf32, #tpu.memory_space<vmem>>, vector<1x1x7x16xf32>
    %197 = vector.shape_cast %196 : vector<1x1x7x16xf32> to vector<7x16xf32>
    %198 = vector.shape_cast %195 : vector<7x16xf32> to vector<1x1x7x16xf32>
    tpu.vector_store %arg26[%c0_82, %c2, %c0_83, %c0_84], %198 {strides = array<i32>} : memref<1x4x7x16xf32, #tpu.memory_space<vmem>>, vector<1x1x7x16xf32>,
    %199 = arith.truncf %195 : vector<7x16xf32> to vector<7x16xbf16>
    %cst_85 = arith.constant dense<0.000000e+00> : vector<7x8xf32>
    %200 = tpu.matmul %199, %185, %cst_85 {dimension_numbers = #tpu.dot_dimension_numbers<[1], [0], [0], [1], [0, 0, 1, 1], [], []>} : vector<7x16xbf16>, vector<16x8xbf16>, vector<7x8xf32> -> vector<7x8xf32>
    %201 = vector.extract_strided_slice %137 {offsets = [0, 24], sizes = [7, 8], strides = [1, 1]} : vector<7x32xbf16> to vector<7x8xbf16>
    %202 = vector.extract_strided_slice %146 {offsets = [0, 24], sizes = [16, 8], strides = [1, 1]} : vector<16x64xbf16> to vector<16x8xbf16>
    %203 = vector.extract_strided_slice %146 {offsets = [0, 56], sizes = [16, 8], strides = [1, 1]} : vector<16x64xbf16> to vector<16x8xbf16>
    %cst_86 = arith.constant dense<0.000000e+00> : vector<7x16xf32>
    %204 = tpu.matmul %201, %202, %cst_86 {dimension_numbers = #tpu.dot_dimension_numbers<[1], [1], [0], [0], [0, 0, 1, 0], [], []>} : vector<7x8xbf16>, vector<16x8xbf16>, vector<7x16xf32> -> vector<7x16xf32>
    %cst_87 = arith.constant dense<0xFF800000> : vector<7xf32>
    %205 = vector.multi_reduction <maximumf>, %204, %cst_87 [1] : vector<7x16xf32> to vector<7xf32>
    %206 = vector.shape_cast %205 : vector<7xf32> to vector<7x1xf32>
    %207 = vector.broadcast %206 : vector<7x1xf32> to vector<7x16xf32>
    %208 = arith.subf %204, %207 : vector<7x16xf32>
    %209 = math.exp %208 : vector<7x16xf32>
    %cst_88 = arith.constant dense<0.000000e+00> : vector<7xf32>
    %210 = vector.multi_reduction <add>, %209, %cst_88 [1] : vector<7x16xf32> to vector<7xf32>
    %211 = vector.shape_cast %210 : vector<7xf32> to vector<7x1xf32>
    %212 = vector.broadcast %211 : vector<7x1xf32> to vector<7x16xf32>
    %213 = arith.divf %209, %212 : vector<7x16xf32>
    %c0_89 = arith.constant 0 : index
    %c3 = arith.constant 3 : index
    %c0_90 = arith.constant 0 : index
    %c0_91 = arith.constant 0 : index
    %214 = vector.load %arg26[%c0_89, %c3, %c0_90, %c0_91] : memref<1x4x7x16xf32, #tpu.memory_space<vmem>>, vector<1x1x7x16xf32>
    %215 = vector.shape_cast %214 : vector<1x1x7x16xf32> to vector<7x16xf32>
    %216 = vector.shape_cast %213 : vector<7x16xf32> to vector<1x1x7x16xf32>
    tpu.vector_store %arg26[%c0_89, %c3, %c0_90, %c0_91], %216 {strides = array<i32>} : memref<1x4x7x16xf32, #tpu.memory_space<vmem>>, vector<1x1x7x16xf32>,
    %217 = arith.truncf %213 : vector<7x16xf32> to vector<7x16xbf16>
    %cst_92 = arith.constant dense<0.000000e+00> : vector<7x8xf32>
    %218 = tpu.matmul %217, %203, %cst_92 {dimension_numbers = #tpu.dot_dimension_numbers<[1], [0], [0], [1], [0, 0, 1, 1], [], []>} : vector<7x16xbf16>, vector<16x8xbf16>, vector<7x8xf32> -> vector<7x8xf32>
    %219 = tpu.concatenate %164, %182, %200, %218 in 1 : vector<7x8xf32>, vector<7x8xf32>, vector<7x8xf32>, vector<7x8xf32> -> vector<7x32xf32>
    %220 = arith.truncf %219 : vector<7x32xf32> to vector<7x32xbf16>
    %c0_93 = arith.constant 0 : index
    %c0_94 = arith.constant 0 : index
    %c0_95 = arith.constant 0 : index
    %221 = vector.load %arg15[%c0_93, %c0_94, %c0_95] : memref<1x32x32xbf16, #tpu.memory_space<vmem>>, vector<1x32x32xbf16>
    %222 = vector.shape_cast %221 : vector<1x32x32xbf16> to vector<32x32xbf16>
    %cst_96 = arith.constant dense<0.000000e+00> : vector<7x32xf32>
    %223 = tpu.matmul %220, %222, %cst_96 {dimension_numbers = #tpu.dot_dimension_numbers<[1], [0], [0], [1], [0, 0, 1, 1], [], []>} : vector<7x32xbf16>, vector<32x32xbf16>, vector<7x32xf32> -> vector<7x32xf32>
    %c0_97 = arith.constant 0 : index
    %c0_98 = arith.constant 0 : index
    %c0_99 = arith.constant 0 : index
    %224 = vector.load %arg16[%c0_97, %c0_98, %c0_99] : memref<1x1x32xf32, #tpu.memory_space<vmem>>, vector<1x1x32xf32>
    %225 = vector.shape_cast %224 : vector<1x1x32xf32> to vector<1x32xf32>
    %226 = vector.broadcast %225 : vector<1x32xf32> to vector<7x32xf32>
    %227 = arith.addf %223, %226 : vector<7x32xf32>
    %228 = arith.addf %128, %227 : vector<7x32xf32>
    %c0_100 = arith.constant 0 : index
    %c0_101 = arith.constant 0 : index
    %c0_102 = arith.constant 0 : index
    %229 = vector.load %arg17[%c0_100, %c0_101, %c0_102] : memref<1x1x32xf32, #tpu.memory_space<vmem>>, vector<1x1x32xf32>
    %230 = vector.shape_cast %229 : vector<1x1x32xf32> to vector<1x32xf32>
    %c0_103 = arith.constant 0 : index
    %c0_104 = arith.constant 0 : index
    %c0_105 = arith.constant 0 : index
    %231 = vector.load %arg18[%c0_103, %c0_104, %c0_105] : memref<1x1x32xf32, #tpu.memory_space<vmem>>, vector<1x1x32xf32>
    %232 = vector.shape_cast %231 : vector<1x1x32xf32> to vector<1x32xf32>
    %cst_106 = arith.constant dense<0.000000e+00> : vector<7xf32>
    %233 = vector.multi_reduction <add>, %228, %cst_106 [1] : vector<7x32xf32> to vector<7xf32>
    %234 = vector.shape_cast %233 : vector<7xf32> to vector<7x1xf32>
    %cst_107 = arith.constant 3.200000e+01 : f32
    %235 = vector.broadcast %cst_107 : f32 to vector<7x1xf32>
    %236 = arith.divf %234, %235 : vector<7x1xf32>
    %237 = vector.broadcast %236 : vector<7x1xf32> to vector<7x32xf32>
    %238 = arith.subf %228, %237 : vector<7x32xf32>
    %239 = arith.mulf %238, %238 : vector<7x32xf32>
    %cst_108 = arith.constant dense<0.000000e+00> : vector<7xf32>
    %240 = vector.multi_reduction <add>, %239, %cst_108 [1] : vector<7x32xf32> to vector<7xf32>
    %241 = vector.shape_cast %240 : vector<7xf32> to vector<7x1xf32>
    %cst_109 = arith.constant 3.200000e+01 : f32
    %242 = vector.broadcast %cst_109 : f32 to vector<7x1xf32>
    %243 = arith.divf %241, %242 : vector<7x1xf32>
    %244 = vector.broadcast %236 : vector<7x1xf32> to vector<7x32xf32>
    %245 = arith.subf %228, %244 : vector<7x32xf32>
    %cst_110 = arith.constant 9.99999974E-6 : f32
    %246 = vector.broadcast %cst_110 : f32 to vector<7x1xf32>
    %247 = arith.addf %243, %246 : vector<7x1xf32>
    %248 = math.rsqrt %247 : vector<7x1xf32>
    %249 = vector.broadcast %248 : vector<7x1xf32> to vector<7x32xf32>
    %250 = arith.mulf %245, %249 : vector<7x32xf32>
    %251 = vector.broadcast %230 : vector<1x32xf32> to vector<7x32xf32>
    %252 = arith.mulf %250, %251 : vector<7x32xf32>
    %253 = vector.broadcast %232 : vector<1x32xf32> to vector<7x32xf32>
    %254 = arith.addf %252, %253 : vector<7x32xf32>
    %255 = arith.truncf %254 : vector<7x32xf32> to vector<7x32xbf16>
    %c0_111 = arith.constant 0 : index
    %c0_112 = arith.constant 0 : index
    %c0_113 = arith.constant 0 : index
    %256 = vector.load %arg19[%c0_111, %c0_112, %c0_113] : memref<1x32x64xbf16, #tpu.memory_space<vmem>>, vector<1x32x64xbf16>
    %257 = vector.shape_cast %256 : vector<1x32x64xbf16> to vector<32x64xbf16>
    %cst_114 = arith.constant dense<0.000000e+00> : vector<7x64xf32>
    %258 = tpu.matmul %255, %257, %cst_114 {dimension_numbers = #tpu.dot_dimension_numbers<[1], [0], [0], [1], [0, 0, 1, 1], [], []>} : vector<7x32xbf16>, vector<32x64xbf16>, vector<7x64xf32> -> vector<7x64xf32>
    %c0_115 = arith.constant 0 : index
    %c0_116 = arith.constant 0 : index
    %c0_117 = arith.constant 0 : index
    %259 = vector.load %arg20[%c0_115, %c0_116, %c0_117] : memref<1x1x64xf32, #tpu.memory_space<vmem>>, vector<1x1x64xf32>
    %260 = vector.shape_cast %259 : vector<1x1x64xf32> to vector<1x64xf32>
    %261 = vector.broadcast %260 : vector<1x64xf32> to vector<7x64xf32>
    %262 = arith.addf %258, %261 : vector<7x64xf32>
    %cst_118 = arith.constant 0.000000e+00 : f32
    %263 = vector.broadcast %cst_118 : f32 to vector<7x64xf32>
    %264 = arith.maximumf %262, %263 : vector<7x64xf32>
    %265 = arith.truncf %264 : vector<7x64xf32> to vector<7x64xbf16>
    %c0_119 = arith.constant 0 : index
    %c0_120 = arith.constant 0 : index
    %c0_121 = arith.constant 0 : index
    %266 = vector.load %arg21[%c0_119, %c0_120, %c0_121] : memref<1x64x32xbf16, #tpu.memory_space<vmem>>, vector<1x64x32xbf16>
    %267 = vector.shape_cast %266 : vector<1x64x32xbf16> to vector<64x32xbf16>
    %cst_122 = arith.constant dense<0.000000e+00> : vector<7x32xf32>
    %268 = tpu.matmul %265, %267, %cst_122 {dimension_numbers = #tpu.dot_dimension_numbers<[1], [0], [0], [1], [0, 0, 1, 1], [], []>} : vector<7x64xbf16>, vector<64x32xbf16>, vector<7x32xf32> -> vector<7x32xf32>
    %c0_123 = arith.constant 0 : index
    %c0_124 = arith.constant 0 : index
    %c0_125 = arith.constant 0 : index
    %269 = vector.load %arg22[%c0_123, %c0_124, %c0_125] : memref<1x1x32xf32, #tpu.memory_space<vmem>>, vector<1x1x32xf32>
    %270 = vector.shape_cast %269 : vector<1x1x32xf32> to vector<1x32xf32>
    %271 = vector.broadcast %270 : vector<1x32xf32> to vector<7x32xf32>
    %272 = arith.addf %268, %271 : vector<7x32xf32>
    %273 = arith.addf %254, %272 : vector<7x32xf32>
    %c0_126 = arith.constant 0 : index
    %c0_127 = arith.constant 0 : index
    %c0_128 = arith.constant 0 : index
    %274 = vector.load %arg23[%c0_126, %c0_127, %c0_128] : memref<1x1x32xf32, #tpu.memory_space<vmem>>, vector<1x1x32xf32>
    %275 = vector.shape_cast %274 : vector<1x1x32xf32> to vector<1x32xf32>
    %c0_129 = arith.constant 0 : index
    %c0_130 = arith.constant 0 : index
    %c0_131 = arith.constant 0 : index
    %276 = vector.load %arg24[%c0_129, %c0_130, %c0_131] : memref<1x1x32xf32, #tpu.memory_space<vmem>>, vector<1x1x32xf32>
    %277 = vector.shape_cast %276 : vector<1x1x32xf32> to vector<1x32xf32>
    %cst_132 = arith.constant dense<0.000000e+00> : vector<7xf32>
    %278 = vector.multi_reduction <add>, %273, %cst_132 [1] : vector<7x32xf32> to vector<7xf32>
    %279 = vector.shape_cast %278 : vector<7xf32> to vector<7x1xf32>
    %cst_133 = arith.constant 3.200000e+01 : f32
    %280 = vector.broadcast %cst_133 : f32 to vector<7x1xf32>
    %281 = arith.divf %279, %280 : vector<7x1xf32>
    %282 = vector.broadcast %281 : vector<7x1xf32> to vector<7x32xf32>
    %283 = arith.subf %273, %282 : vector<7x32xf32>
    %284 = arith.mulf %283, %283 : vector<7x32xf32>
    %cst_134 = arith.constant dense<0.000000e+00> : vector<7xf32>
    %285 = vector.multi_reduction <add>, %284, %cst_134 [1] : vector<7x32xf32> to vector<7xf32>
    %286 = vector.shape_cast %285 : vector<7xf32> to vector<7x1xf32>
    %cst_135 = arith.constant 3.200000e+01 : f32
    %287 = vector.broadcast %cst_135 : f32 to vector<7x1xf32>
    %288 = arith.divf %286, %287 : vector<7x1xf32>
    %289 = vector.broadcast %281 : vector<7x1xf32> to vector<7x32xf32>
    %290 = arith.subf %273, %289 : vector<7x32xf32>
    %cst_136 = arith.constant 9.99999974E-6 : f32
    %291 = vector.broadcast %cst_136 : f32 to vector<7x1xf32>
    %292 = arith.addf %288, %291 : vector<7x1xf32>
    %293 = math.rsqrt %292 : vector<7x1xf32>
    %294 = vector.broadcast %293 : vector<7x1xf32> to vector<7x32xf32>
    %295 = arith.mulf %290, %294 : vector<7x32xf32>
    %296 = vector.broadcast %275 : vector<1x32xf32> to vector<7x32xf32>
    %297 = arith.mulf %295, %296 : vector<7x32xf32>
    %298 = vector.broadcast %277 : vector<1x32xf32> to vector<7x32xf32>
    %299 = arith.addf %297, %298 : vector<7x32xf32>
    %c0_137 = arith.constant 0 : index
    %c0_138 = arith.constant 0 : index
    %300 = vector.load %arg27[%c0_137, %c0_138] : memref<7x32xf32, #tpu.memory_space<vmem>>, vector<7x32xf32>
    tpu.vector_store %arg27[%c0_137, %c0_138], %299 {strides = array<i32>} : memref<7x32xf32, #tpu.memory_space<vmem>>, vector<7x32xf32>,
    %c0_139 = arith.constant 0 : index
    %c0_140 = arith.constant 0 : index
    %c0_141 = arith.constant 0 : index
    %301 = vector.load %arg25[%c0_139, %c0_140, %c0_141] : memref<1x7x32xf32, #tpu.memory_space<vmem>>, vector<1x7x32xf32>
    %302 = vector.shape_cast %301 : vector<1x7x32xf32> to vector<7x32xf32>
    %303 = vector.shape_cast %299 : vector<7x32xf32> to vector<1x7x32xf32>
    tpu.vector_store %arg25[%c0_139, %c0_140, %c0_141], %303 {strides = array<i32>} : memref<1x7x32xf32, #tpu.memory_space<vmem>>, vector<1x7x32xf32>,
    return
  }
  func.func @transform_0(%arg0: i32, %arg1: i32) -> (i32, i32, i32) {
    %c0_i32 = arith.constant 0 : i32
    %c0_i32_0 = arith.constant 0 : i32
    %c0_i32_1 = arith.constant 0 : i32
    return %arg0, %c0_i32, %c0_i32_0 : i32, i32, i32
  }
  func.func @transform_1(%arg0: i32, %arg1: i32) -> (i32, i32, i32) {
    %c0_i32 = arith.constant 0 : i32
    %c0_i32_0 = arith.constant 0 : i32
    %c0_i32_1 = arith.constant 0 : i32
    return %arg0, %c0_i32, %c0_i32_0 : i32, i32, i32
  }
  func.func @transform_2(%arg0: i32, %arg1: i32) -> (i32, i32, i32) {
    %c0_i32 = arith.constant 0 : i32
    %c0_i32_0 = arith.constant 0 : i32
    %c0_i32_1 = arith.constant 0 : i32
    return %arg0, %c0_i32, %c0_i32_0 : i32, i32, i32
  }
  func.func @transform_3(%arg0: i32, %arg1: i32) -> (i32, i32, i32) {
    %c0_i32 = arith.constant 0 : i32
    %c0_i32_0 = arith.constant 0 : i32
    %c0_i32_1 = arith.constant 0 : i32
    return %arg1, %c0_i32, %c0_i32_0 : i32, i32, i32
  }
  func.func @transform_4(%arg0: i32, %arg1: i32) -> (i32, i32, i32) {
    %c0_i32 = arith.constant 0 : i32
    %c0_i32_0 = arith.constant 0 : i32
    %c0_i32_1 = arith.constant 0 : i32
    return %arg1, %c0_i32, %c0_i32_0 : i32, i32, i32
  }
  func.func @transform_5(%arg0: i32, %arg1: i32) -> (i32, i32, i32) {
    %c0_i32 = arith.constant 0 : i32
    %c0_i32_0 = arith.constant 0 : i32
    %c0_i32_1 = arith.constant 0 : i32
    return %arg1, %c0_i32, %c0_i32_0 : i32, i32, i32
  }
  func.func @transform_6(%arg0: i32, %arg1: i32) -> (i32, i32, i32) {
    %c0_i32 = arith.constant 0 : i32
    %c0_i32_0 = arith.constant 0 : i32
    %c0_i32_1 = arith.constant 0 : i32
    return %arg1, %c0_i32, %c0_i32_0 : i32, i32, i32
  }
  func.func @transform_7(%arg0: i32, %arg1: i32) -> (i32, i32, i32) {
    %c0_i32 = arith.constant 0 : i32
    %c0_i32_0 = arith.constant 0 : i32
    %c0_i32_1 = arith.constant 0 : i32
    return %arg1, %c0_i32, %c0_i32_0 : i32, i32, i32
  }
  func.func @transform_8(%arg0: i32, %arg1: i32) -> (i32, i32, i32) {
    %c0_i32 = arith.constant 0 : i32
    %c0_i32_0 = arith.constant 0 : i32
    %c0_i32_1 = arith.constant 0 : i32
    return %arg1, %c0_i32, %c0_i32_0 : i32, i32, i32
  }
  func.func @transform_9(%arg0: i32, %arg1: i32) -> (i32, i32, i32) {
    %c0_i32 = arith.constant 0 : i32
    %c0_i32_0 = arith.constant 0 : i32
    %c0_i32_1 = arith.constant 0 : i32
    return %arg1, %c0_i32, %c0_i32_0 : i32, i32, i32
  }
  func.func @transform_10(%arg0: i32, %arg1: i32) -> (i32, i32, i32) {
    %c0_i32 = arith.constant 0 : i32
    %c0_i32_0 = arith.constant 0 : i32
    %c0_i32_1 = arith.constant 0 : i32
    return %arg1, %c0_i32, %c0_i32_0 : i32, i32, i32
  }
  func.func @transform_11(%arg0: i32, %arg1: i32) -> (i32, i32, i32) {
    %c0_i32 = arith.constant 0 : i32
    %c0_i32_0 = arith.constant 0 : i32
    %c0_i32_1 = arith.constant 0 : i32
    return %arg1, %c0_i32, %c0_i32_0 : i32, i32, i32
  }
  func.func @transform_12(%arg0: i32, %arg1: i32) -> (i32, i32, i32) {
    %c0_i32 = arith.constant 0 : i32
    %c0_i32_0 = arith.constant 0 : i32
    %c0_i32_1 = arith.constant 0 : i32
    return %arg1, %c0_i32, %c0_i32_0 : i32, i32, i32
  }
  func.func @transform_13(%arg0: i32, %arg1: i32) -> (i32, i32, i32) {
    %c0_i32 = arith.constant 0 : i32
    %c0_i32_0 = arith.constant 0 : i32
    %c0_i32_1 = arith.constant 0 : i32
    return %arg1, %c0_i32, %c0_i32_0 : i32, i32, i32
  }
  func.func @transform_14(%arg0: i32, %arg1: i32) -> (i32, i32, i32) {
    %c0_i32 = arith.constant 0 : i32
    %c0_i32_0 = arith.constant 0 : i32
    %c0_i32_1 = arith.constant 0 : i32
    return %arg1, %c0_i32, %c0_i32_0 : i32, i32, i32
  }
  func.func @transform_15(%arg0: i32, %arg1: i32) -> (i32, i32, i32) {
    %c0_i32 = arith.constant 0 : i32
    %c0_i32_0 = arith.constant 0 : i32
    %c0_i32_1 = arith.constant 0 : i32
    return %arg1, %c0_i32, %c0_i32_0 : i32, i32, i32
  }
  func.func @transform_16(%arg0: i32, %arg1: i32) -> (i32, i32, i32) {
    %c0_i32 = arith.constant 0 : i32
    %c0_i32_0 = arith.constant 0 : i32
    %c0_i32_1 = arith.constant 0 : i32
    return %arg1, %c0_i32, %c0_i32_0 : i32, i32, i32
  }
  func.func @transform_17(%arg0: i32, %arg1: i32) -> (i32, i32, i32) {
    %c0_i32 = arith.constant 0 : i32
    %c0_i32_0 = arith.constant 0 : i32
    %c0_i32_1 = arith.constant 0 : i32
    return %arg1, %c0_i32, %c0_i32_0 : i32, i32, i32
  }
  func.func @transform_18(%arg0: i32, %arg1: i32) -> (i32, i32, i32) {
    %c0_i32 = arith.constant 0 : i32
    %c0_i32_0 = arith.constant 0 : i32
    %c0_i32_1 = arith.constant 0 : i32
    return %arg1, %c0_i32, %c0_i32_0 : i32, i32, i32
  }
  func.func @transform_19(%arg0: i32, %arg1: i32) -> (i32, i32, i32) {
    %c0_i32 = arith.constant 0 : i32
    %c0_i32_0 = arith.constant 0 : i32
    %c0_i32_1 = arith.constant 0 : i32
    return %arg1, %c0_i32, %c0_i32_0 : i32, i32, i32
  }
  func.func @transform_20(%arg0: i32, %arg1: i32) -> (i32, i32, i32) {
    %c0_i32 = arith.constant 0 : i32
    %c0_i32_0 = arith.constant 0 : i32
    %c0_i32_1 = arith.constant 0 : i32
    return %arg1, %c0_i32, %c0_i32_0 : i32, i32, i32
  }
  func.func @transform_21(%arg0: i32, %arg1: i32) -> (i32, i32, i32) {
    %c0_i32 = arith.constant 0 : i32
    %c0_i32_0 = arith.constant 0 : i32
    %c0_i32_1 = arith.constant 0 : i32
    return %arg1, %c0_i32, %c0_i32_0 : i32, i32, i32
  }
  func.func @transform_22(%arg0: i32, %arg1: i32) -> (i32, i32, i32) {
    %c0_i32 = arith.constant 0 : i32
    %c0_i32_0 = arith.constant 0 : i32
    %c0_i32_1 = arith.constant 0 : i32
    return %arg1, %c0_i32, %c0_i32_0 : i32, i32, i32
  }
  func.func @transform_23(%arg0: i32, %arg1: i32) -> (i32, i32, i32) {
    %c0_i32 = arith.constant 0 : i32
    %c0_i32_0 = arith.constant 0 : i32
    %c0_i32_1 = arith.constant 0 : i32
    return %arg0, %c0_i32, %c0_i32_0 : i32, i32, i32
  }
  func.func @transform_24(%arg0: i32, %arg1: i32) -> (i32, i32, i32, i32) {
    %c0_i32 = arith.constant 0 : i32
    %c0_i32_0 = arith.constant 0 : i32
    %c0_i32_1 = arith.constant 0 : i32
    return %arg1, %arg0, %c0_i32, %c0_i32_0 : i32, i32, i32, i32
  }
}

</mosaic_0001>

<llo_original>
// kernel: decoder_forward.1
$region0: #{decoder_forward.1}
  #allocation0 [shape = 'u32[]', space=smem, size = 0x4, offset = 0x4, fixed_abs, tag = 'smem constant byte address 0x4 - core index']
  #allocation1 [shape = 'u32[72,128]{1,0:T(1,128)}', space=vmem, size = 0x9000, scoped, tag = 'internal scratch']
  #allocation2 [shape = 'f32[7,32]{1,0:T(8,128)}', space=vmem, size = 0x1000, scoped, tag = 'scratch operand']
  %s0 = inlined_call_operand.vmem [shape: f32[2,7,32], index: 0, kind: input, shape index: {}]
  %s1 = inlined_call_operand.vmem [shape: f32[2,16,32], index: 1, kind: input, shape index: {}]
  %s2 = inlined_call_operand.vmem [shape: f32[2,1,7], index: 2, kind: input, shape index: {}]
  %s3 = inlined_call_operand.vmem [shape: bf16[2,32,96], index: 3, kind: input, shape index: {}]
  %s4 = inlined_call_operand.vmem [shape: f32[2,1,96], index: 4, kind: input, shape index: {}]
  %s5 = inlined_call_operand.vmem [shape: bf16[2,32,32], index: 5, kind: input, shape index: {}]
  %s6 = inlined_call_operand.vmem [shape: f32[2,1,32], index: 6, kind: input, shape index: {}]
  %s7 = inlined_call_operand.vmem [shape: f32[2,1,32], index: 7, kind: input, shape index: {}]
  %s8 = inlined_call_operand.vmem [shape: f32[2,1,32], index: 8, kind: input, shape index: {}]
  %s9 = inlined_call_operand.vmem [shape: bf16[2,32,32], index: 9, kind: input, shape index: {}]
  %s10 = inlined_call_operand.vmem [shape: f32[2,1,32], index: 10, kind: input, shape index: {}]
  %s11 = inlined_call_operand.vmem [shape: bf16[2,32,64], index: 11, kind: input, shape index: {}]
  %s12 = inlined_call_operand.vmem [shape: f32[2,1,64], index: 12, kind: input, shape index: {}]
  %s13 = inlined_call_operand.vmem [shape: bf16[2,32,32], index: 13, kind: input, shape index: {}]
  %s14 = inlined_call_operand.vmem [shape: f32[2,1,32], index: 14, kind: input, shape index: {}]
  %s15 = inlined_call_operand.vmem [shape: f32[2,1,32], index: 15, kind: input, shape index: {}]
  %s16 = inlined_call_operand.vmem [shape: f32[2,1,32], index: 16, kind: input, shape index: {}]
  %s17 = inlined_call_operand.vmem [shape: bf16[2,32,64], index: 17, kind: input, shape index: {}]
  %s18 = inlined_call_operand.vmem [shape: f32[2,1,64], index: 18, kind: input, shape index: {}]
  %s19 = inlined_call_operand.vmem [shape: bf16[2,64,32], index: 19, kind: input, shape index: {}]
  %s20 = inlined_call_operand.vmem [shape: f32[2,1,32], index: 20, kind: input, shape index: {}]
  %s21 = inlined_call_operand.vmem [shape: f32[2,1,32], index: 21, kind: input, shape index: {}]
  %s22 = inlined_call_operand.vmem [shape: f32[2,1,32], index: 22, kind: input, shape index: {}]
  %s23 = inlined_call_operand.vmem [shape: f32[2,7,32], index: 23, kind: output, shape index: {0}]
  %s24 = inlined_call_operand.vmem [shape: f32[2,8,7,16], index: 24, kind: output, shape index: {1}]
  %25 = xla_tuple %s23, %s24
  %s26 = sld [smem:[#allocation0]]
  $region137: #{decoder_forward.1} parent=0
    _
  %s28 = ssub.s32 1, %s26
  %s29 = scalar_select 0, %s28, %s26
  loop: start=0, step=1, limit=6
  $region2: #{decoder_forward.1} parent=0 // loop_pre_header
    _
  $region3: #{decoder_forward.1} parent=0 // loop_header
    %s31 = sphi 0, %s35
    %p32 = scmp.ge.s32.totalorder %s31, 6
    %s38 = sphi 0, %s50
    %s39 = sphi 0, %s46
    %s40 = sphi 0, %s38
    %s41 = sphi 0, %s39
    %s42 = sphi 0, %s40
    %s43 = sphi 0, %s41
    %s53 = sphi 0, %s55
    %s56 = sphi 0, %s53
    %s57 = sphi 0, %s56
    %s73 = sphi 0, %s57
    %s79 = sphi 0, %s81
    %s82 = sphi 0, %s79
    %s83 = sphi 0, %s82
    %s99 = sphi 0, %s83
    %s105 = sphi 0, %s107
    %s108 = sphi 0, %s105
    %s109 = sphi 0, %s108
    %s125 = sphi 0, %s109
    %s131 = sphi 0, %s133
    %s134 = sphi 0, %s131
    %s135 = sphi 0, %s134
    %s151 = sphi 0, %s135
    %s157 = sphi 0, %s159
    %s160 = sphi 0, %s157
    %s161 = sphi 0, %s160
    %s177 = sphi 0, %s161
    %s183 = sphi 0, %s185
    %s186 = sphi 0, %s183
    %s187 = sphi 0, %s186
    %s203 = sphi 0, %s187
    %s209 = sphi 0, %s211
    %s212 = sphi 0, %s209
    %s213 = sphi 0, %s212
    %s229 = sphi 0, %s213
    %s235 = sphi 0, %s237
    %s238 = sphi 0, %s235
    %s239 = sphi 0, %s238
    %s255 = sphi 0, %s239
    %s261 = sphi 0, %s263
    %s264 = sphi 0, %s261
    %s265 = sphi 0, %s264
    %s281 = sphi 0, %s265
    %s287 = sphi 0, %s289
    %s290 = sphi 0, %s287
    %s291 = sphi 0, %s290
    %s307 = sphi 0, %s291
    %s313 = sphi 0, %s315
    %s316 = sphi 0, %s313
    %s317 = sphi 0, %s316
    %s333 = sphi 0, %s317
    %s339 = sphi 0, %s341
    %s342 = sphi 0, %s339
    %s343 = sphi 0, %s342
    %s359 = sphi 0, %s343
    %s365 = sphi 0, %s367
    %s368 = sphi 0, %s365
    %s369 = sphi 0, %s368
    %s385 = sphi 0, %s369
    %s391 = sphi 0, %s393
    %s394 = sphi 0, %s391
    %s395 = sphi 0, %s394
    %s411 = sphi 0, %s395
    %s417 = sphi 0, %s419
    %s420 = sphi 0, %s417
    %s421 = sphi 0, %s420
    %s437 = sphi 0, %s421
    %s443 = sphi 0, %s445
    %s446 = sphi 0, %s443
    %s447 = sphi 0, %s446
    %s463 = sphi 0, %s447
    %s469 = sphi 0, %s471
    %s472 = sphi 0, %s469
    %s473 = sphi 0, %s472
    %s489 = sphi 0, %s473
    %s495 = sphi 0, %s497
    %s498 = sphi 0, %s495
    %s499 = sphi 0, %s498
    %s515 = sphi 0, %s499
    %s521 = sphi 0, %s523
    %s524 = sphi 0, %s521
    %s525 = sphi 0, %s524
    %s541 = sphi 0, %s525
    %s547 = sphi 0, %s549
    %s550 = sphi 0, %s547
    %s551 = sphi 0, %s550
    %s567 = sphi 0, %s551
    %s573 = sphi 0, %s575
    %s576 = sphi 0, %s573
    %s577 = sphi 0, %s576
    %s593 = sphi 0, %s577
    %s599 = sphi 0, %s601
    %s602 = sphi 0, %s599
    %s603 = sphi 0, %s602
    %s619 = sphi 0, %s603
    %s625 = sphi 0, %s627
    %s628 = sphi 0, %s625
    %s629 = sphi 0, %s628
    %s645 = sphi 0, %s629
    %s651 = sphi 0, %s653
    %s654 = sphi 0, %s651
    %s655 = sphi 0, %s654
    %s671 = sphi 0, %s655
    %s679 = sphi 0, %s681
    %s682 = sphi 0, %s679
    %s683 = sphi 0, %s682
    %s699 = sphi 0, %s683
  $region4: #{decoder_forward.1} parent=0 // loop_header_branch
    %34 = sbr.rel (%p32) target = $region8
  $region5: #{decoder_forward.1} parent=0 // loop_body
    %s36 = ssub.s32 %s31, 1
    %s37 = ssub.s32 %s31, 2
    %s44 = sadd.s32 1, %s39
    %p45 = scmp.ge.s32.totalorder %s44, 2
    %s46 = scalar_select %p45, 0, %s44
    %s47 = sadd.s32 1, %s38
    %s48 = scalar_select %p45, %s47, %s38
    %p49 = scmp.ge.s32.totalorder %s48, 2
    %s50 = scalar_select %p49, 0, %s48
    %s51 = ssub.s32 %s38, %s50
    %p52 = scmp.eq.s32.totalorder %s51, 0
    %s54 = sadd.s32 %s53, 1
    %s55 = scalar_select %p52, %s53, %s54
    %p58 = pneg %p52
    %p59 = scmp.eq.s32.totalorder %s31, 3
    %p60 = por %p58, %p59
    %p61 = scmp.ne.s32.totalorder %s53, %s56
    %p62 = scmp.eq.s32.totalorder %s31, 0
    %p63 = por %p61, %p62
    %p64 = scmp.ne.s32.totalorder %s53, %s56
    %p65 = scmp.eq.s32.totalorder %s36, 3
    %p66 = por %p64, %p65
    %p67 = scmp.ne.s32.totalorder %s56, %s57
    %p68 = scmp.eq.s32.totalorder %s36, 0
    %p69 = por %p67, %p68
    %p70 = scmp.ne.s32.totalorder %s56, %s57
    %p71 = scmp.eq.s32.totalorder %s37, 3
    %p72 = por %p70, %p71
    %p74 = scmp.ne.s32.totalorder %s57, %s73
    %p75 = scmp.eq.s32.totalorder %s37, 0
    %p76 = por %p74, %p75
    %s77 = ssub.s32 %s38, %s50
    %p78 = scmp.eq.s32.totalorder %s77, 0
    %s80 = sadd.s32 %s79, 1
    %s81 = scalar_select %p78, %s79, %s80
    %p84 = pneg %p78
    %p85 = scmp.eq.s32.totalorder %s31, 3
    %p86 = por %p84, %p85
    %p87 = scmp.ne.s32.totalorder %s79, %s82
    %p88 = scmp.eq.s32.totalorder %s31, 0
    %p89 = por %p87, %p88
    %p90 = scmp.ne.s32.totalorder %s79, %s82
    %p91 = scmp.eq.s32.totalorder %s36, 3
    %p92 = por %p90, %p91
    %p93 = scmp.ne.s32.totalorder %s82, %s83
    %p94 = scmp.eq.s32.totalorder %s36, 0
    %p95 = por %p93, %p94
    %p96 = scmp.ne.s32.totalorder %s82, %s83
    %p97 = scmp.eq.s32.totalorder %s37, 3
    %p98 = por %p96, %p97
    %p100 = scmp.ne.s32.totalorder %s83, %s99
    %p101 = scmp.eq.s32.totalorder %s37, 0
    %p102 = por %p100, %p101
    %s103 = ssub.s32 %s38, %s50
    %p104 = scmp.eq.s32.totalorder %s103, 0
    %s106 = sadd.s32 %s105, 1
    %s107 = scalar_select %p104, %s105, %s106
    %p110 = pneg %p104
    %p111 = scmp.eq.s32.totalorder %s31, 3
    %p112 = por %p110, %p111
    %p113 = scmp.ne.s32.totalorder %s105, %s108
    %p114 = scmp.eq.s32.totalorder %s31, 0
    %p115 = por %p113, %p114
    %p116 = scmp.ne.s32.totalorder %s105, %s108
    %p117 = scmp.eq.s32.totalorder %s36, 3
    %p118 = por %p116, %p117
    %p119 = scmp.ne.s32.totalorder %s108, %s109
    %p120 = scmp.eq.s32.totalorder %s36, 0
    %p121 = por %p119, %p120
    %p122 = scmp.ne.s32.totalorder %s108, %s109
    %p123 = scmp.eq.s32.totalorder %s37, 3
    %p124 = por %p122, %p123
    %p126 = scmp.ne.s32.totalorder %s109, %s125
    %p127 = scmp.eq.s32.totalorder %s37, 0
    %p128 = por %p126, %p127
    %s129 = ssub.s32 %s39, %s46
    %p130 = scmp.eq.s32.totalorder %s129, 0
    %s132 = sadd.s32 %s131, 1
    %s133 = scalar_select %p130, %s131, %s132
    %p136 = pneg %p130
    %p137 = scmp.eq.s32.totalorder %s31, 3
    %p138 = por %p136, %p137
    %p139 = scmp.ne.s32.totalorder %s131, %s134
    %p140 = scmp.eq.s32.totalorder %s31, 0
    %p141 = por %p139, %p140
    %p142 = scmp.ne.s32.totalorder %s131, %s134
    %p143 = scmp.eq.s32.totalorder %s36, 3
    %p144 = por %p142, %p143
    %p145 = scmp.ne.s32.totalorder %s134, %s135
    %p146 = scmp.eq.s32.totalorder %s36, 0
    %p147 = por %p145, %p146
    %p148 = scmp.ne.s32.totalorder %s134, %s135
    %p149 = scmp.eq.s32.totalorder %s37, 3
    %p150 = por %p148, %p149
    %p152 = scmp.ne.s32.totalorder %s135, %s151
    %p153 = scmp.eq.s32.totalorder %s37, 0
    %p154 = por %p152, %p153
    %s155 = ssub.s32 %s39, %s46
    %p156 = scmp.eq.s32.totalorder %s155, 0
    %s158 = sadd.s32 %s157, 1
    %s159 = scalar_select %p156, %s157, %s158
    %p162 = pneg %p156
    %p163 = scmp.eq.s32.totalorder %s31, 3
    %p164 = por %p162, %p163
    %p165 = scmp.ne.s32.totalorder %s157, %s160
    %p166 = scmp.eq.s32.totalorder %s31, 0
    %p167 = por %p165, %p166
    %p168 = scmp.ne.s32.totalorder %s157, %s160
    %p169 = scmp.eq.s32.totalorder %s36, 3
    %p170 = por %p168, %p169
    %p171 = scmp.ne.s32.totalorder %s160, %s161
    %p172 = scmp.eq.s32.totalorder %s36, 0
    %p173 = por %p171, %p172
    %p174 = scmp.ne.s32.totalorder %s160, %s161
    %p175 = scmp.eq.s32.totalorder %s37, 3
    %p176 = por %p174, %p175
    %p178 = scmp.ne.s32.totalorder %s161, %s177
    %p179 = scmp.eq.s32.totalorder %s37, 0
    %p180 = por %p178, %p179
    %s181 = ssub.s32 %s39, %s46
    %p182 = scmp.eq.s32.totalorder %s181, 0
    %s184 = sadd.s32 %s183, 1
    %s185 = scalar_select %p182, %s183, %s184
    %p188 = pneg %p182
    %p189 = scmp.eq.s32.totalorder %s31, 3
    %p190 = por %p188, %p189
    %p191 = scmp.ne.s32.totalorder %s183, %s186
    %p192 = scmp.eq.s32.totalorder %s31, 0
    %p193 = por %p191, %p192
    %p194 = scmp.ne.s32.totalorder %s183, %s186
    %p195 = scmp.eq.s32.totalorder %s36, 3
    %p196 = por %p194, %p195
    %p197 = scmp.ne.s32.totalorder %s186, %s187
    %p198 = scmp.eq.s32.totalorder %s36, 0
    %p199 = por %p197, %p198
    %p200 = scmp.ne.s32.totalorder %s186, %s187
    %p201 = scmp.eq.s32.totalorder %s37, 3
    %p202 = por %p200, %p201
    %p204 = scmp.ne.s32.totalorder %s187, %s203
    %p205 = scmp.eq.s32.totalorder %s37, 0
    %p206 = por %p204, %p205
    %s207 = ssub.s32 %s39, %s46
    %p208 = scmp.eq.s32.totalorder %s207, 0
    %s210 = sadd.s32 %s209, 1
    %s211 = scalar_select %p208, %s209, %s210
    %p214 = pneg %p208
    %p215 = scmp.eq.s32.totalorder %s31, 3
    %p216 = por %p214, %p215
    %p217 = scmp.ne.s32.totalorder %s209, %s212
    %p218 = scmp.eq.s32.totalorder %s31, 0
    %p219 = por %p217, %p218
    %p220 = scmp.ne.s32.totalorder %s209, %s212
    %p221 = scmp.eq.s32.totalorder %s36, 3
    %p222 = por %p220, %p221
    %p223 = scmp.ne.s32.totalorder %s212, %s213
    %p224 = scmp.eq.s32.totalorder %s36, 0
    %p225 = por %p223, %p224
    %p226 = scmp.ne.s32.totalorder %s212, %s213
    %p227 = scmp.eq.s32.totalorder %s37, 3
    %p228 = por %p226, %p227
    %p230 = scmp.ne.s32.totalorder %s213, %s229
    %p231 = scmp.eq.s32.totalorder %s37, 0
    %p232 = por %p230, %p231
    %s233 = ssub.s32 %s39, %s46
    %p234 = scmp.eq.s32.totalorder %s233, 0
    %s236 = sadd.s32 %s235, 1
    %s237 = scalar_select %p234, %s235, %s236
    %p240 = pneg %p234
    %p241 = scmp.eq.s32.totalorder %s31, 3
    %p242 = por %p240, %p241
    %p243 = scmp.ne.s32.totalorder %s235, %s238
    %p244 = scmp.eq.s32.totalorder %s31, 0
    %p245 = por %p243, %p244
    %p246 = scmp.ne.s32.totalorder %s235, %s238
    %p247 = scmp.eq.s32.totalorder %s36, 3
    %p248 = por %p246, %p247
    %p249 = scmp.ne.s32.totalorder %s238, %s239
    %p250 = scmp.eq.s32.totalorder %s36, 0
    %p251 = por %p249, %p250
    %p252 = scmp.ne.s32.totalorder %s238, %s239
    %p253 = scmp.eq.s32.totalorder %s37, 3
    %p254 = por %p252, %p253
    %p256 = scmp.ne.s32.totalorder %s239, %s255
    %p257 = scmp.eq.s32.totalorder %s37, 0
    %p258 = por %p256, %p257
    %s259 = ssub.s32 %s39, %s46
    %p260 = scmp.eq.s32.totalorder %s259, 0
    %s262 = sadd.s32 %s261, 1
    %s263 = scalar_select %p260, %s261, %s262
    %p266 = pneg %p260
    %p267 = scmp.eq.s32.totalorder %s31, 3
    %p268 = por %p266, %p267
    %p269 = scmp.ne.s32.totalorder %s261, %s264
    %p270 = scmp.eq.s32.totalorder %s31, 0
    %p271 = por %p269, %p270
    %p272 = scmp.ne.s32.totalorder %s261, %s264
    %p273 = scmp.eq.s32.totalorder %s36, 3
    %p274 = por %p272, %p273
    %p275 = scmp.ne.s32.totalorder %s264, %s265
    %p276 = scmp.eq.s32.totalorder %s36, 0
    %p277 = por %p275, %p276
    %p278 = scmp.ne.s32.totalorder %s264, %s265
    %p279 = scmp.eq.s32.totalorder %s37, 3
    %p280 = por %p278, %p279
    %p282 = scmp.ne.s32.totalorder %s265, %s281
    %p283 = scmp.eq.s32.totalorder %s37, 0
    %p284 = por %p282, %p283
    %s285 = ssub.s32 %s39, %s46
    %p286 = scmp.eq.s32.totalorder %s285, 0
    %s288 = sadd.s32 %s287, 1
    %s289 = scalar_select %p286, %s287, %s288
    %p292 = pneg %p286
    %p293 = scmp.eq.s32.totalorder %s31, 3
    %p294 = por %p292, %p293
    %p295 = scmp.ne.s32.totalorder %s287, %s290
    %p296 = scmp.eq.s32.totalorder %s31, 0
    %p297 = por %p295, %p296
    %p298 = scmp.ne.s32.totalorder %s287, %s290
    %p299 = scmp.eq.s32.totalorder %s36, 3
    %p300 = por %p298, %p299
    %p301 = scmp.ne.s32.totalorder %s290, %s291
    %p302 = scmp.eq.s32.totalorder %s36, 0
    %p303 = por %p301, %p302
    %p304 = scmp.ne.s32.totalorder %s290, %s291
    %p305 = scmp.eq.s32.totalorder %s37, 3
    %p306 = por %p304, %p305
    %p308 = scmp.ne.s32.totalorder %s291, %s307
    %p309 = scmp.eq.s32.totalorder %s37, 0
    %p310 = por %p308, %p309
    %s311 = ssub.s32 %s39, %s46
    %p312 = scmp.eq.s32.totalorder %s311, 0
    %s314 = sadd.s32 %s313, 1
    %s315 = scalar_select %p312, %s313, %s314
    %p318 = pneg %p312
    %p319 = scmp.eq.s32.totalorder %s31, 3
    %p320 = por %p318, %p319
    %p321 = scmp.ne.s32.totalorder %s313, %s316
    %p322 = scmp.eq.s32.totalorder %s31, 0
    %p323 = por %p321, %p322
    %p324 = scmp.ne.s32.totalorder %s313, %s316
    %p325 = scmp.eq.s32.totalorder %s36, 3
    %p326 = por %p324, %p325
    %p327 = scmp.ne.s32.totalorder %s316, %s317
    %p328 = scmp.eq.s32.totalorder %s36, 0
    %p329 = por %p327, %p328
    %p330 = scmp.ne.s32.totalorder %s316, %s317
    %p331 = scmp.eq.s32.totalorder %s37, 3
    %p332 = por %p330, %p331
    %p334 = scmp.ne.s32.totalorder %s317, %s333
    %p335 = scmp.eq.s32.totalorder %s37, 0
    %p336 = por %p334, %p335
    %s337 = ssub.s32 %s39, %s46
    %p338 = scmp.eq.s32.totalorder %s337, 0
    %s340 = sadd.s32 %s339, 1
    %s341 = scalar_select %p338, %s339, %s340
    %p344 = pneg %p338
    %p345 = scmp.eq.s32.totalorder %s31, 3
    %p346 = por %p344, %p345
    %p347 = scmp.ne.s32.totalorder %s339, %s342
    %p348 = scmp.eq.s32.totalorder %s31, 0
    %p349 = por %p347, %p348
    %p350 = scmp.ne.s32.totalorder %s339, %s342
    %p351 = scmp.eq.s32.totalorder %s36, 3
    %p352 = por %p350, %p351
    %p353 = scmp.ne.s32.totalorder %s342, %s343
    %p354 = scmp.eq.s32.totalorder %s36, 0
    %p355 = por %p353, %p354
    %p356 = scmp.ne.s32.totalorder %s342, %s343
    %p357 = scmp.eq.s32.totalorder %s37, 3
    %p358 = por %p356, %p357
    %p360 = scmp.ne.s32.totalorder %s343, %s359
    %p361 = scmp.eq.s32.totalorder %s37, 0
    %p362 = por %p360, %p361
    %s363 = ssub.s32 %s39, %s46
    %p364 = scmp.eq.s32.totalorder %s363, 0
    %s366 = sadd.s32 %s365, 1
    %s367 = scalar_select %p364, %s365, %s366
    %p370 = pneg %p364
    %p371 = scmp.eq.s32.totalorder %s31, 3
    %p372 = por %p370, %p371
    %p373 = scmp.ne.s32.totalorder %s365, %s368
    %p374 = scmp.eq.s32.totalorder %s31, 0
    %p375 = por %p373, %p374
    %p376 = scmp.ne.s32.totalorder %s365, %s368
    %p377 = scmp.eq.s32.totalorder %s36, 3
    %p378 = por %p376, %p377
    %p379 = scmp.ne.s32.totalorder %s368, %s369
    %p380 = scmp.eq.s32.totalorder %s36, 0
    %p381 = por %p379, %p380
    %p382 = scmp.ne.s32.totalorder %s368, %s369
    %p383 = scmp.eq.s32.totalorder %s37, 3
    %p384 = por %p382, %p383
    %p386 = scmp.ne.s32.totalorder %s369, %s385
    %p387 = scmp.eq.s32.totalorder %s37, 0
    %p388 = por %p386, %p387
    %s389 = ssub.s32 %s39, %s46
    %p390 = scmp.eq.s32.totalorder %s389, 0
    %s392 = sadd.s32 %s391, 1
    %s393 = scalar_select %p390, %s391, %s392
    %p396 = pneg %p390
    %p397 = scmp.eq.s32.totalorder %s31, 3
    %p398 = por %p396, %p397
    %p399 = scmp.ne.s32.totalorder %s391, %s394
    %p400 = scmp.eq.s32.totalorder %s31, 0
    %p401 = por %p399, %p400
    %p402 = scmp.ne.s32.totalorder %s391, %s394
    %p403 = scmp.eq.s32.totalorder %s36, 3
    %p404 = por %p402, %p403
    %p405 = scmp.ne.s32.totalorder %s394, %s395
    %p406 = scmp.eq.s32.totalorder %s36, 0
    %p407 = por %p405, %p406
    %p408 = scmp.ne.s32.totalorder %s394, %s395
    %p409 = scmp.eq.s32.totalorder %s37, 3
    %p410 = por %p408, %p409
    %p412 = scmp.ne.s32.totalorder %s395, %s411
    %p413 = scmp.eq.s32.totalorder %s37, 0
    %p414 = por %p412, %p413
    %s415 = ssub.s32 %s39, %s46
    %p416 = scmp.eq.s32.totalorder %s415, 0
    %s418 = sadd.s32 %s417, 1
    %s419 = scalar_select %p416, %s417, %s418
    %p422 = pneg %p416
    %p423 = scmp.eq.s32.totalorder %s31, 3
    %p424 = por %p422, %p423
    %p425 = scmp.ne.s32.totalorder %s417, %s420
    %p426 = scmp.eq.s32.totalorder %s31, 0
    %p427 = por %p425, %p426
    %p428 = scmp.ne.s32.totalorder %s417, %s420
    %p429 = scmp.eq.s32.totalorder %s36, 3
    %p430 = por %p428, %p429
    %p431 = scmp.ne.s32.totalorder %s420, %s421
    %p432 = scmp.eq.s32.totalorder %s36, 0
    %p433 = por %p431, %p432
    %p434 = scmp.ne.s32.totalorder %s420, %s421
    %p435 = scmp.eq.s32.totalorder %s37, 3
    %p436 = por %p434, %p435
    %p438 = scmp.ne.s32.totalorder %s421, %s437
    %p439 = scmp.eq.s32.totalorder %s37, 0
    %p440 = por %p438, %p439
    %s441 = ssub.s32 %s39, %s46
    %p442 = scmp.eq.s32.totalorder %s441, 0
    %s444 = sadd.s32 %s443, 1
    %s445 = scalar_select %p442, %s443, %s444
    %p448 = pneg %p442
    %p449 = scmp.eq.s32.totalorder %s31, 3
    %p450 = por %p448, %p449
    %p451 = scmp.ne.s32.totalorder %s443, %s446
    %p452 = scmp.eq.s32.totalorder %s31, 0
    %p453 = por %p451, %p452
    %p454 = scmp.ne.s32.totalorder %s443, %s446
    %p455 = scmp.eq.s32.totalorder %s36, 3
    %p456 = por %p454, %p455
    %p457 = scmp.ne.s32.totalorder %s446, %s447
    %p458 = scmp.eq.s32.totalorder %s36, 0
    %p459 = por %p457, %p458
    %p460 = scmp.ne.s32.totalorder %s446, %s447
    %p461 = scmp.eq.s32.totalorder %s37, 3
    %p462 = por %p460, %p461
    %p464 = scmp.ne.s32.totalorder %s447, %s463
    %p465 = scmp.eq.s32.totalorder %s37, 0
    %p466 = por %p464, %p465
    %s467 = ssub.s32 %s39, %s46
    %p468 = scmp.eq.s32.totalorder %s467, 0
    %s470 = sadd.s32 %s469, 1
    %s471 = scalar_select %p468, %s469, %s470
    %p474 = pneg %p468
    %p475 = scmp.eq.s32.totalorder %s31, 3
    %p476 = por %p474, %p475
    %p477 = scmp.ne.s32.totalorder %s469, %s472
    %p478 = scmp.eq.s32.totalorder %s31, 0
    %p479 = por %p477, %p478
    %p480 = scmp.ne.s32.totalorder %s469, %s472
    %p481 = scmp.eq.s32.totalorder %s36, 3
    %p482 = por %p480, %p481
    %p483 = scmp.ne.s32.totalorder %s472, %s473
    %p484 = scmp.eq.s32.totalorder %s36, 0
    %p485 = por %p483, %p484
    %p486 = scmp.ne.s32.totalorder %s472, %s473
    %p487 = scmp.eq.s32.totalorder %s37, 3
    %p488 = por %p486, %p487
    %p490 = scmp.ne.s32.totalorder %s473, %s489
    %p491 = scmp.eq.s32.totalorder %s37, 0
    %p492 = por %p490, %p491
    %s493 = ssub.s32 %s39, %s46
    %p494 = scmp.eq.s32.totalorder %s493, 0
    %s496 = sadd.s32 %s495, 1
    %s497 = scalar_select %p494, %s495, %s496
    %p500 = pneg %p494
    %p501 = scmp.eq.s32.totalorder %s31, 3
    %p502 = por %p500, %p501
    %p503 = scmp.ne.s32.totalorder %s495, %s498
    %p504 = scmp.eq.s32.totalorder %s31, 0
    %p505 = por %p503, %p504
    %p506 = scmp.ne.s32.totalorder %s495, %s498
    %p507 = scmp.eq.s32.totalorder %s36, 3
    %p508 = por %p506, %p507
    %p509 = scmp.ne.s32.totalorder %s498, %s499
    %p510 = scmp.eq.s32.totalorder %s36, 0
    %p511 = por %p509, %p510
    %p512 = scmp.ne.s32.totalorder %s498, %s499
    %p513 = scmp.eq.s32.totalorder %s37, 3
    %p514 = por %p512, %p513
    %p516 = scmp.ne.s32.totalorder %s499, %s515
    %p517 = scmp.eq.s32.totalorder %s37, 0
    %p518 = por %p516, %p517
    %s519 = ssub.s32 %s39, %s46
    %p520 = scmp.eq.s32.totalorder %s519, 0
    %s522 = sadd.s32 %s521, 1
    %s523 = scalar_select %p520, %s521, %s522
    %p526 = pneg %p520
    %p527 = scmp.eq.s32.totalorder %s31, 3
    %p528 = por %p526, %p527
    %p529 = scmp.ne.s32.totalorder %s521, %s524
    %p530 = scmp.eq.s32.totalorder %s31, 0
    %p531 = por %p529, %p530
    %p532 = scmp.ne.s32.totalorder %s521, %s524
    %p533 = scmp.eq.s32.totalorder %s36, 3
    %p534 = por %p532, %p533
    %p535 = scmp.ne.s32.totalorder %s524, %s525
    %p536 = scmp.eq.s32.totalorder %s36, 0
    %p537 = por %p535, %p536
    %p538 = scmp.ne.s32.totalorder %s524, %s525
    %p539 = scmp.eq.s32.totalorder %s37, 3
    %p540 = por %p538, %p539
    %p542 = scmp.ne.s32.totalorder %s525, %s541
    %p543 = scmp.eq.s32.totalorder %s37, 0
    %p544 = por %p542, %p543
    %s545 = ssub.s32 %s39, %s46
    %p546 = scmp.eq.s32.totalorder %s545, 0
    %s548 = sadd.s32 %s547, 1
    %s549 = scalar_select %p546, %s547, %s548
    %p552 = pneg %p546
    %p553 = scmp.eq.s32.totalorder %s31, 3
    %p554 = por %p552, %p553
    %p555 = scmp.ne.s32.totalorder %s547, %s550
    %p556 = scmp.eq.s32.totalorder %s31, 0
    %p557 = por %p555, %p556
    %p558 = scmp.ne.s32.totalorder %s547, %s550
    %p559 = scmp.eq.s32.totalorder %s36, 3
    %p560 = por %p558, %p559
    %p561 = scmp.ne.s32.totalorder %s550, %s551
    %p562 = scmp.eq.s32.totalorder %s36, 0
    %p563 = por %p561, %p562
    %p564 = scmp.ne.s32.totalorder %s550, %s551
    %p565 = scmp.eq.s32.totalorder %s37, 3
    %p566 = por %p564, %p565
    %p568 = scmp.ne.s32.totalorder %s551, %s567
    %p569 = scmp.eq.s32.totalorder %s37, 0
    %p570 = por %p568, %p569
    %s571 = ssub.s32 %s39, %s46
    %p572 = scmp.eq.s32.totalorder %s571, 0
    %s574 = sadd.s32 %s573, 1
    %s575 = scalar_select %p572, %s573, %s574
    %p578 = pneg %p572
    %p579 = scmp.eq.s32.totalorder %s31, 3
    %p580 = por %p578, %p579
    %p581 = scmp.ne.s32.totalorder %s573, %s576
    %p582 = scmp.eq.s32.totalorder %s31, 0
    %p583 = por %p581, %p582
    %p584 = scmp.ne.s32.totalorder %s573, %s576
    %p585 = scmp.eq.s32.totalorder %s36, 3
    %p586 = por %p584, %p585
    %p587 = scmp.ne.s32.totalorder %s576, %s577
    %p588 = scmp.eq.s32.totalorder %s36, 0
    %p589 = por %p587, %p588
    %p590 = scmp.ne.s32.totalorder %s576, %s577
    %p591 = scmp.eq.s32.totalorder %s37, 3
    %p592 = por %p590, %p591
    %p594 = scmp.ne.s32.totalorder %s577, %s593
    %p595 = scmp.eq.s32.totalorder %s37, 0
    %p596 = por %p594, %p595
    %s597 = ssub.s32 %s39, %s46
    %p598 = scmp.eq.s32.totalorder %s597, 0
    %s600 = sadd.s32 %s599, 1
    %s601 = scalar_select %p598, %s599, %s600
    %p604 = pneg %p598
    %p605 = scmp.eq.s32.totalorder %s31, 3
    %p606 = por %p604, %p605
    %p607 = scmp.ne.s32.totalorder %s599, %s602
    %p608 = scmp.eq.s32.totalorder %s31, 0
    %p609 = por %p607, %p608
    %p610 = scmp.ne.s32.totalorder %s599, %s602
    %p611 = scmp.eq.s32.totalorder %s36, 3
    %p612 = por %p610, %p611
    %p613 = scmp.ne.s32.totalorder %s602, %s603
    %p614 = scmp.eq.s32.totalorder %s36, 0
    %p615 = por %p613, %p614
    %p616 = scmp.ne.s32.totalorder %s602, %s603
    %p617 = scmp.eq.s32.totalorder %s37, 3
    %p618 = por %p616, %p617
    %p620 = scmp.ne.s32.totalorder %s603, %s619
    %p621 = scmp.eq.s32.totalorder %s37, 0
    %p622 = por %p620, %p621
    %s623 = ssub.s32 %s39, %s46
    %p624 = scmp.eq.s32.totalorder %s623, 0
    %s626 = sadd.s32 %s625, 1
    %s627 = scalar_select %p624, %s625, %s626
    %p630 = pneg %p624
    %p631 = scmp.eq.s32.totalorder %s31, 3
    %p632 = por %p630, %p631
    %p633 = scmp.ne.s32.totalorder %s625, %s628
    %p634 = scmp.eq.s32.totalorder %s31, 0
    %p635 = por %p633, %p634
    %p636 = scmp.ne.s32.totalorder %s625, %s628
    %p637 = scmp.eq.s32.totalorder %s36, 3
    %p638 = por %p636, %p637
    %p639 = scmp.ne.s32.totalorder %s628, %s629
    %p640 = scmp.eq.s32.totalorder %s36, 0
    %p641 = por %p639, %p640
    %p642 = scmp.ne.s32.totalorder %s628, %s629
    %p643 = scmp.eq.s32.totalorder %s37, 3
    %p644 = por %p642, %p643
    %p646 = scmp.ne.s32.totalorder %s629, %s645
    %p647 = scmp.eq.s32.totalorder %s37, 0
    %p648 = por %p646, %p647
    %s649 = ssub.s32 %s38, %s50
    %p650 = scmp.eq.s32.totalorder %s649, 0
    %s652 = sadd.s32 %s651, 1
    %s653 = scalar_select %p650, %s651, %s652
    %p656 = pneg %p650
    %p657 = scmp.eq.s32.totalorder %s31, 3
    %p658 = por %p656, %p657
    %p659 = scmp.ne.s32.totalorder %s651, %s654
    %p660 = scmp.eq.s32.totalorder %s31, 0
    %p661 = por %p659, %p660
    %p662 = scmp.ne.s32.totalorder %s651, %s654
    %p663 = scmp.eq.s32.totalorder %s36, 3
    %p664 = por %p662, %p663
    %p665 = scmp.ne.s32.totalorder %s654, %s655
    %p666 = scmp.eq.s32.totalorder %s36, 0
    %p667 = por %p665, %p666
    %p668 = scmp.ne.s32.totalorder %s654, %s655
    %p669 = scmp.eq.s32.totalorder %s37, 3
    %p670 = por %p668, %p669
    %p672 = scmp.ne.s32.totalorder %s655, %s671
    %p673 = scmp.eq.s32.totalorder %s37, 0
    %p674 = por %p672, %p673
    %s675 = ssub.s32 %s39, %s46
    %s676 = ssub.s32 %s38, %s50
    %s677 = sor.u32 %s675, %s676
    %p678 = scmp.eq.s32.totalorder %s677, 0
    %s680 = sadd.s32 %s679, 1
    %s681 = scalar_select %p678, %s679, %s680
    %p684 = pneg %p678
    %p685 = scmp.eq.s32.totalorder %s31, 3
    %p686 = por %p684, %p685
    %p687 = scmp.ne.s32.totalorder %s679, %s682
    %p688 = scmp.eq.s32.totalorder %s31, 0
    %p689 = por %p687, %p688
    %p690 = scmp.ne.s32.totalorder %s679, %s682
    %p691 = scmp.eq.s32.totalorder %s36, 3
    %p692 = por %p690, %p691
    %p693 = scmp.ne.s32.totalorder %s682, %s683
    %p694 = scmp.eq.s32.totalorder %s36, 0
    %p695 = por %p693, %p694
    %p696 = scmp.ne.s32.totalorder %s682, %s683
    %p697 = scmp.eq.s32.totalorder %s37, 3
    %p698 = por %p696, %p697
    %p700 = scmp.ne.s32.totalorder %s683, %s699
    %p701 = scmp.eq.s32.totalorder %s37, 0
    %p702 = por %p700, %p701
    %p703 = scmp.le.s32.totalorder 1, %s31
    %p704 = scmp.lt.s32.totalorder %s31, 5
    %p705 = pnand %p703, %p704
    %p706 = pneg %p705
    // Predicated region
    $region9: #{decoder_forward.1} parent=5 // pred_check
      _
    $region10: #{decoder_forward.1} parent=5 // pred_check_branch
      %708 = sbr.rel (%p705) target = $region12
    $region11: #{decoder_forward.1} parent=5 // pred_region
      %s709 = ssub.s32 %s31, 1
    $region12: #{decoder_forward.1} parent=5 // pred_fallthru
      _
    %p710 = scmp.lt.s32.totalorder %s31, 4
    // Predicated region
    $region13: #{decoder_forward.1} parent=5 // pred_check
      %p711 = pneg %p710
    $region14: #{decoder_forward.1} parent=5 // pred_check_branch
      %713 = sbr.rel (%p711) target = $region16
    $region15: #{decoder_forward.1} parent=5 // pred_region
      // Predicated region
      $region17: #{decoder_forward.1} parent=15 // pred_check
        %p714 = pneg %p63
      $region18: #{decoder_forward.1} parent=15 // pred_check_branch
        %716 = sbr.rel (%p714) target = $region20
      $region19: #{decoder_forward.1} parent=15 // pred_region
        %p717 = scmp.lt.s32.totalorder %s38, 1
        %s718 = scalar_select %p717, %s38, 1
        %s719 = smul.addr %s718, 8
        %s720 = scalar_lea.vmem %s0, %s719
      $region20: #{decoder_forward.1} parent=15 // pred_fallthru
        _
      // Predicated region
      $region21: #{decoder_forward.1} parent=15 // pred_check
        %p721 = pneg %p89
      $region22: #{decoder_forward.1} parent=15 // pred_check_branch
        %723 = sbr.rel (%p721) target = $region24
      $region23: #{decoder_forward.1} parent=15 // pred_region
        %p724 = scmp.lt.s32.totalorder %s38, 1
        %s725 = scalar_select %p724, %s38, 1
        %s726 = smul.addr %s725, 2
        %s727 = smul.addr %s726, 8
        %s728 = scalar_lea.vmem %s1, %s727
      $region24: #{decoder_forward.1} parent=15 // pred_fallthru
        _
      // Predicated region
      $region25: #{decoder_forward.1} parent=15 // pred_check
        %p729 = pneg %p115
      $region26: #{decoder_forward.1} parent=15 // pred_check_branch
        %731 = sbr.rel (%p729) target = $region28
      $region27: #{decoder_forward.1} parent=15 // pred_region
        %p732 = scmp.lt.s32.totalorder %s38, 1
        %s733 = scalar_select %p732, %s38, 1
        %s734 = scalar_lea.vmem %s2, %s733
      $region28: #{decoder_forward.1} parent=15 // pred_fallthru
        _
      // Predicated region
      $region29: #{decoder_forward.1} parent=15 // pred_check
        %p735 = pneg %p141
      $region30: #{decoder_forward.1} parent=15 // pred_check_branch
        %737 = sbr.rel (%p735) target = $region32
      $region31: #{decoder_forward.1} parent=15 // pred_region
        %p738 = scmp.lt.s32.totalorder %s39, 1
        %s739 = scalar_select %p738, %s39, 1
        %s740 = smul.addr %s739, 4
        %s741 = smul.addr %s740, 4
        %s742 = scalar_lea.vmem %s3, %s741
      $region32: #{decoder_forward.1} parent=15 // pred_fallthru
        _
      // Predicated region
      $region33: #{decoder_forward.1} parent=15 // pred_check
        %p743 = pneg %p167
      $region34: #{decoder_forward.1} parent=15 // pred_check_branch
        %745 = sbr.rel (%p743) target = $region36
      $region35: #{decoder_forward.1} parent=15 // pred_region
        %p746 = scmp.lt.s32.totalorder %s39, 1
        %s747 = scalar_select %p746, %s39, 1
        %s748 = scalar_lea.vmem %s4, %s747
      $region36: #{decoder_forward.1} parent=15 // pred_fallthru
        _
      // Predicated region
      $region37: #{decoder_forward.1} parent=15 // pred_check
        %p749 = pneg %p193
      $region38: #{decoder_forward.1} parent=15 // pred_check_branch
        %751 = sbr.rel (%p749) target = $region40
      $region39: #{decoder_forward.1} parent=15 // pred_region
        %p752 = scmp.lt.s32.totalorder %s39, 1
        %s753 = scalar_select %p752, %s39, 1
        %s754 = smul.addr %s753, 4
        %s755 = smul.addr %s754, 4
        %s756 = scalar_lea.vmem %s5, %s755
      $region40: #{decoder_forward.1} parent=15 // pred_fallthru
        _
      // Predicated region
      $region41: #{decoder_forward.1} parent=15 // pred_check
        %p757 = pneg %p219
      $region42: #{decoder_forward.1} parent=15 // pred_check_branch
        %759 = sbr.rel (%p757) target = $region44
      $region43: #{decoder_forward.1} parent=15 // pred_region
        %p760 = scmp.lt.s32.totalorder %s39, 1
        %s761 = scalar_select %p760, %s39, 1
        %s762 = scalar_lea.vmem %s6, %s761
      $region44: #{decoder_forward.1} parent=15 // pred_fallthru
        _
      // Predicated region
      $region45: #{decoder_forward.1} parent=15 // pred_check
        %p763 = pneg %p245
      $region46: #{decoder_forward.1} parent=15 // pred_check_branch
        %765 = sbr.rel (%p763) target = $region48
      $region47: #{decoder_forward.1} parent=15 // pred_region
        %p766 = scmp.lt.s32.totalorder %s39, 1
        %s767 = scalar_select %p766, %s39, 1
        %s768 = scalar_lea.vmem %s7, %s767
      $region48: #{decoder_forward.1} parent=15 // pred_fallthru
        _
      // Predicated region
      $region49: #{decoder_forward.1} parent=15 // pred_check
        %p769 = pneg %p271
      $region50: #{decoder_forward.1} parent=15 // pred_check_branch
        %771 = sbr.rel (%p769) target = $region52
      $region51: #{decoder_forward.1} parent=15 // pred_region
        %p772 = scmp.lt.s32.totalorder %s39, 1
        %s773 = scalar_select %p772, %s39, 1
        %s774 = scalar_lea.vmem %s8, %s773
      $region52: #{decoder_forward.1} parent=15 // pred_fallthru
        _
      // Predicated region
      $region53: #{decoder_forward.1} parent=15 // pred_check
        %p775 = pneg %p297
      $region54: #{decoder_forward.1} parent=15 // pred_check_branch
        %777 = sbr.rel (%p775) target = $region56
      $region55: #{decoder_forward.1} parent=15 // pred_region
        %p778 = scmp.lt.s32.totalorder %s39, 1
        %s779 = scalar_select %p778, %s39, 1
        %s780 = smul.addr %s779, 4
        %s781 = smul.addr %s780, 4
        %s782 = scalar_lea.vmem %s9, %s781
      $region56: #{decoder_forward.1} parent=15 // pred_fallthru
        _
      // Predicated region
      $region57: #{decoder_forward.1} parent=15 // pred_check
        %p783 = pneg %p323
      $region58: #{decoder_forward.1} parent=15 // pred_check_branch
        %785 = sbr.rel (%p783) target = $region60
      $region59: #{decoder_forward.1} parent=15 // pred_region
        %p786 = scmp.lt.s32.totalorder %s39, 1
        %s787 = scalar_select %p786, %s39, 1
        %s788 = scalar_lea.vmem %s10, %s787
      $region60: #{decoder_forward.1} parent=15 // pred_fallthru
        _
      // Predicated region
      $region61: #{decoder_forward.1} parent=15 // pred_check
        %p789 = pneg %p349
      $region62: #{decoder_forward.1} parent=15 // pred_check_branch
        %791 = sbr.rel (%p789) target = $region64
      $region63: #{decoder_forward.1} parent=15 // pred_region
        %p792 = scmp.lt.s32.totalorder %s39, 1
        %s793 = scalar_select %p792, %s39, 1
        %s794 = smul.addr %s793, 4
        %s795 = smul.addr %s794, 4
        %s796 = scalar_lea.vmem %s11, %s795
      $region64: #{decoder_forward.1} parent=15 // pred_fallthru
        _
      // Predicated region
      $region65: #{decoder_forward.1} parent=15 // pred_check
        %p797 = pneg %p375
      $region66: #{decoder_forward.1} parent=15 // pred_check_branch
        %799 = sbr.rel (%p797) target = $region68
      $region67: #{decoder_forward.1} parent=15 // pred_region
        %p800 = scmp.lt.s32.totalorder %s39, 1
        %s801 = scalar_select %p800, %s39, 1
        %s802 = scalar_lea.vmem %s12, %s801
      $region68: #{decoder_forward.1} parent=15 // pred_fallthru
        _
      // Predicated region
      $region69: #{decoder_forward.1} parent=15 // pred_check
        %p803 = pneg %p401
      $region70: #{decoder_forward.1} parent=15 // pred_check_branch
        %805 = sbr.rel (%p803) target = $region72
      $region71: #{decoder_forward.1} parent=15 // pred_region
        %p806 = scmp.lt.s32.totalorder %s39, 1
        %s807 = scalar_select %p806, %s39, 1
        %s808 = smul.addr %s807, 4
        %s809 = smul.addr %s808, 4
        %s810 = scalar_lea.vmem %s13, %s809
      $region72: #{decoder_forward.1} parent=15 // pred_fallthru
        _
      // Predicated region
      $region73: #{decoder_forward.1} parent=15 // pred_check
        %p811 = pneg %p427
      $region74: #{decoder_forward.1} parent=15 // pred_check_branch
        %813 = sbr.rel (%p811) target = $region76
      $region75: #{decoder_forward.1} parent=15 // pred_region
        %p814 = scmp.lt.s32.totalorder %s39, 1
        %s815 = scalar_select %p814, %s39, 1
        %s816 = scalar_lea.vmem %s14, %s815
      $region76: #{decoder_forward.1} parent=15 // pred_fallthru
        _
      // Predicated region
      $region77: #{decoder_forward.1} parent=15 // pred_check
        %p817 = pneg %p453
      $region78: #{decoder_forward.1} parent=15 // pred_check_branch
        %819 = sbr.rel (%p817) target = $region80
      $region79: #{decoder_forward.1} parent=15 // pred_region
        %p820 = scmp.lt.s32.totalorder %s39, 1
        %s821 = scalar_select %p820, %s39, 1
        %s822 = scalar_lea.vmem %s15, %s821
      $region80: #{decoder_forward.1} parent=15 // pred_fallthru
        _
      // Predicated region
      $region81: #{decoder_forward.1} parent=15 // pred_check
        %p823 = pneg %p479
      $region82: #{decoder_forward.1} parent=15 // pred_check_branch
        %825 = sbr.rel (%p823) target = $region84
      $region83: #{decoder_forward.1} parent=15 // pred_region
        %p826 = scmp.lt.s32.totalorder %s39, 1
        %s827 = scalar_select %p826, %s39, 1
        %s828 = scalar_lea.vmem %s16, %s827
      $region84: #{decoder_forward.1} parent=15 // pred_fallthru
        _
      // Predicated region
      $region85: #{decoder_forward.1} parent=15 // pred_check
        %p829 = pneg %p505
      $region86: #{decoder_forward.1} parent=15 // pred_check_branch
        %831 = sbr.rel (%p829) target = $region88
      $region87: #{decoder_forward.1} parent=15 // pred_region
        %p832 = scmp.lt.s32.totalorder %s39, 1
        %s833 = scalar_select %p832, %s39, 1
        %s834 = smul.addr %s833, 4
        %s835 = smul.addr %s834, 4
        %s836 = scalar_lea.vmem %s17, %s835
      $region88: #{decoder_forward.1} parent=15 // pred_fallthru
        _
      // Predicated region
      $region89: #{decoder_forward.1} parent=15 // pred_check
        %p837 = pneg %p531
      $region90: #{decoder_forward.1} parent=15 // pred_check_branch
        %839 = sbr.rel (%p837) target = $region92
      $region91: #{decoder_forward.1} parent=15 // pred_region
        %p840 = scmp.lt.s32.totalorder %s39, 1
        %s841 = scalar_select %p840, %s39, 1
        %s842 = scalar_lea.vmem %s18, %s841
      $region92: #{decoder_forward.1} parent=15 // pred_fallthru
        _
      // Predicated region
      $region93: #{decoder_forward.1} parent=15 // pred_check
        %p843 = pneg %p557
      $region94: #{decoder_forward.1} parent=15 // pred_check_branch
        %845 = sbr.rel (%p843) target = $region96
      $region95: #{decoder_forward.1} parent=15 // pred_region
        %p846 = scmp.lt.s32.totalorder %s39, 1
        %s847 = scalar_select %p846, %s39, 1
        %s848 = smul.addr %s847, 8
        %s849 = smul.addr %s848, 4
        %s850 = scalar_lea.vmem %s19, %s849
      $region96: #{decoder_forward.1} parent=15 // pred_fallthru
        _
      // Predicated region
      $region97: #{decoder_forward.1} parent=15 // pred_check
        %p851 = pneg %p583
      $region98: #{decoder_forward.1} parent=15 // pred_check_branch
        %853 = sbr.rel (%p851) target = $region100
      $region99: #{decoder_forward.1} parent=15 // pred_region
        %p854 = scmp.lt.s32.totalorder %s39, 1
        %s855 = scalar_select %p854, %s39, 1
        %s856 = scalar_lea.vmem %s20, %s855
      $region100: #{decoder_forward.1} parent=15 // pred_fallthru
        _
      // Predicated region
      $region101: #{decoder_forward.1} parent=15 // pred_check
        %p857 = pneg %p609
      $region102: #{decoder_forward.1} parent=15 // pred_check_branch
        %859 = sbr.rel (%p857) target = $region104
      $region103: #{decoder_forward.1} parent=15 // pred_region
        %p860 = scmp.lt.s32.totalorder %s39, 1
        %s861 = scalar_select %p860, %s39, 1
        %s862 = scalar_lea.vmem %s21, %s861
      $region104: #{decoder_forward.1} parent=15 // pred_fallthru
        _
      // Predicated region
      $region105: #{decoder_forward.1} parent=15 // pred_check
        %p863 = pneg %p635
      $region106: #{decoder_forward.1} parent=15 // pred_check_branch
        %865 = sbr.rel (%p863) target = $region108
      $region107: #{decoder_forward.1} parent=15 // pred_region
        %p866 = scmp.lt.s32.totalorder %s39, 1
        %s867 = scalar_select %p866, %s39, 1
        %s868 = scalar_lea.vmem %s22, %s867
      $region108: #{decoder_forward.1} parent=15 // pred_fallthru
        _
    $region16: #{decoder_forward.1} parent=5 // pred_fallthru
      _
    %p869 = scmp.le.s32.totalorder 1, %s31
    %p870 = scmp.lt.s32.totalorder %s31, 5
    %p871 = pnand %p869, %p870
    %p872 = pneg %p871
    // Predicated region
    $region109: #{decoder_forward.1} parent=5 // pred_check
      _
    $region110: #{decoder_forward.1} parent=5 // pred_check_branch
      %874 = sbr.rel (%p871) target = $region112
    $region111: #{decoder_forward.1} parent=5 // pred_region
      %s875 = ssub.s32 %s31, 1
      %p876 = scmp.lt.s32.totalorder %s40, 1
      %s877 = scalar_select %p876, %s40, 1
      %s878 = smul.addr %s877, 8
      %s879 = scalar_lea.vmem %s0, %s878
      %p880 = pneg %p69
      %p881 = pneg %p66
      %p882 = scmp.lt.s32.totalorder %s40, 1
      %s883 = scalar_select %p882, %s40, 1
      %s884 = smul.addr %s883, 2
      %s885 = smul.addr %s884, 8
      %s886 = scalar_lea.vmem %s1, %s885
      %p887 = pneg %p95
      %p888 = pneg %p92
      %p889 = scmp.lt.s32.totalorder %s40, 1
      %s890 = scalar_select %p889, %s40, 1
      %s891 = scalar_lea.vmem %s2, %s890
      %p892 = pneg %p121
      %p893 = pneg %p118
      %p894 = scmp.lt.s32.totalorder %s41, 1
      %s895 = scalar_select %p894, %s41, 1
      %s896 = smul.addr %s895, 4
      %s897 = smul.addr %s896, 4
      %s898 = scalar_lea.vmem %s3, %s897
      %p899 = pneg %p147
      %p900 = pneg %p144
      %p901 = scmp.lt.s32.totalorder %s41, 1
      %s902 = scalar_select %p901, %s41, 1
      %s903 = scalar_lea.vmem %s4, %s902
      %p904 = pneg %p173
      %p905 = pneg %p170
      %p906 = scmp.lt.s32.totalorder %s41, 1
      %s907 = scalar_select %p906, %s41, 1
      %s908 = smul.addr %s907, 4
      %s909 = smul.addr %s908, 4
      %s910 = scalar_lea.vmem %s5, %s909
      %p911 = pneg %p199
      %p912 = pneg %p196
      %p913 = scmp.lt.s32.totalorder %s41, 1
      %s914 = scalar_select %p913, %s41, 1
      %s915 = scalar_lea.vmem %s6, %s914
      %p916 = pneg %p225
      %p917 = pneg %p222
      %p918 = scmp.lt.s32.totalorder %s41, 1
      %s919 = scalar_select %p918, %s41, 1
      %s920 = scalar_lea.vmem %s7, %s919
      %p921 = pneg %p251
      %p922 = pneg %p248
      %p923 = scmp.lt.s32.totalorder %s41, 1
      %s924 = scalar_select %p923, %s41, 1
      %s925 = scalar_lea.vmem %s8, %s924
      %p926 = pneg %p277
      %p927 = pneg %p274
      %p928 = scmp.lt.s32.totalorder %s41, 1
      %s929 = scalar_select %p928, %s41, 1
      %s930 = smul.addr %s929, 4
      %s931 = smul.addr %s930, 4
      %s932 = scalar_lea.vmem %s9, %s931
      %p933 = pneg %p303
      %p934 = pneg %p300
      %p935 = scmp.lt.s32.totalorder %s41, 1
      %s936 = scalar_select %p935, %s41, 1
      %s937 = scalar_lea.vmem %s10, %s936
      %p938 = pneg %p329
      %p939 = pneg %p326
      %p940 = scmp.lt.s32.totalorder %s41, 1
      %s941 = scalar_select %p940, %s41, 1
      %s942 = smul.addr %s941, 4
      %s943 = smul.addr %s942, 4
      %s944 = scalar_lea.vmem %s11, %s943
      %p945 = pneg %p355
      %p946 = pneg %p352
      %p947 = scmp.lt.s32.totalorder %s41, 1
      %s948 = scalar_select %p947, %s41, 1
      %s949 = scalar_lea.vmem %s12, %s948
      %p950 = pneg %p381
      %p951 = pneg %p378
      %p952 = scmp.lt.s32.totalorder %s41, 1
      %s953 = scalar_select %p952, %s41, 1
      %s954 = smul.addr %s953, 4
      %s955 = smul.addr %s954, 4
      %s956 = scalar_lea.vmem %s13, %s955
      %p957 = pneg %p407
      %p958 = pneg %p404
      %p959 = scmp.lt.s32.totalorder %s41, 1
      %s960 = scalar_select %p959, %s41, 1
      %s961 = scalar_lea.vmem %s14, %s960
      %p962 = pneg %p433
      %p963 = pneg %p430
      %p964 = scmp.lt.s32.totalorder %s41, 1
      %s965 = scalar_select %p964, %s41, 1
      %s966 = scalar_lea.vmem %s15, %s965
      %p967 = pneg %p459
      %p968 = pneg %p456
      %p969 = scmp.lt.s32.totalorder %s41, 1
      %s970 = scalar_select %p969, %s41, 1
      %s971 = scalar_lea.vmem %s16, %s970
      %p972 = pneg %p485
      %p973 = pneg %p482
      %p974 = scmp.lt.s32.totalorder %s41, 1
      %s975 = scalar_select %p974, %s41, 1
      %s976 = smul.addr %s975, 4
      %s977 = smul.addr %s976, 4
      %s978 = scalar_lea.vmem %s17, %s977
      %p979 = pneg %p511
      %p980 = pneg %p508
      %p981 = scmp.lt.s32.totalorder %s41, 1
      %s982 = scalar_select %p981, %s41, 1
      %s983 = scalar_lea.vmem %s18, %s982
      %p984 = pneg %p537
      %p985 = pneg %p534
      %p986 = scmp.lt.s32.totalorder %s41, 1
      %s987 = scalar_select %p986, %s41, 1
      %s988 = smul.addr %s987, 8
      %s989 = smul.addr %s988, 4
      %s990 = scalar_lea.vmem %s19, %s989
      %p991 = pneg %p563
      %p992 = pneg %p560
      %p993 = scmp.lt.s32.totalorder %s41, 1
      %s994 = scalar_select %p993, %s41, 1
      %s995 = scalar_lea.vmem %s20, %s994
      %p996 = pneg %p589
      %p997 = pneg %p586
      %p998 = scmp.lt.s32.totalorder %s41, 1
      %s999 = scalar_select %p998, %s41, 1
      %s1000 = scalar_lea.vmem %s21, %s999
      %p1001 = pneg %p615
      %p1002 = pneg %p612
      %p1003 = scmp.lt.s32.totalorder %s41, 1
      %s1004 = scalar_select %p1003, %s41, 1
      %s1005 = scalar_lea.vmem %s22, %s1004
      %p1006 = pneg %p641
      %p1007 = pneg %p638
      %p1008 = pneg %p667
      %p1009 = pneg %p664
      %p1010 = scmp.lt.s32.totalorder %s40, 1
      %s1011 = scalar_select %p1010, %s40, 1
      %s1012 = smul.addr %s1011, 8
      %s1013 = scalar_lea.vmem %s23, %s1012
      %p1014 = pneg %p695
      %p1015 = pneg %p692
      %s1016 = smul.u32 4, %s40
      %p1017 = scmp.lt.s32.totalorder %s41, 1
      %s1018 = scalar_select %p1017, %s41, 1
      %p1019 = scmp.lt.s32.totalorder %s1016, 7
      %s1020 = scalar_select %p1019, %s1016, 7
      %s1021 = smul.addr %s1018, 8
      %s1022 = sadd.s32 %s1020, %s1021
      %s1023 = smul.addr %s1022, 8
      %s1024 = scalar_lea.vmem %s24, %s1023
      %p1025 = scmp.lt.s32.totalorder %s40, 1
      %s1026 = scalar_select %p1025, %s40, 1
      %s1027 = smul.addr %s1026, 8
      %s1028 = scalar_lea.vmem %s0, %s1027
      %p1029 = scmp.lt.s32.totalorder %s40, 1
      %s1030 = scalar_select %p1029, %s40, 1
      %s1031 = smul.addr %s1030, 2
      %s1032 = smul.addr %s1031, 8
      %s1033 = scalar_lea.vmem %s1, %s1032
      %p1034 = scmp.lt.s32.totalorder %s40, 1
      %s1035 = scalar_select %p1034, %s40, 1
      %s1036 = scalar_lea.vmem %s2, %s1035
      %p1037 = scmp.lt.s32.totalorder %s41, 1
      %s1038 = scalar_select %p1037, %s41, 1
      %s1039 = smul.addr %s1038, 4
      %s1040 = smul.addr %s1039, 4
      %s1041 = scalar_lea.vmem %s3, %s1040
      %p1042 = scmp.lt.s32.totalorder %s41, 1
      %s1043 = scalar_select %p1042, %s41, 1
      %s1044 = scalar_lea.vmem %s4, %s1043
      %p1045 = scmp.lt.s32.totalorder %s41, 1
      %s1046 = scalar_select %p1045, %s41, 1
      %s1047 = smul.addr %s1046, 4
      %s1048 = smul.addr %s1047, 4
      %s1049 = scalar_lea.vmem %s5, %s1048
      %p1050 = scmp.lt.s32.totalorder %s41, 1
      %s1051 = scalar_select %p1050, %s41, 1
      %s1052 = scalar_lea.vmem %s6, %s1051
      %p1053 = scmp.lt.s32.totalorder %s41, 1
      %s1054 = scalar_select %p1053, %s41, 1
      %s1055 = scalar_lea.vmem %s7, %s1054
      %p1056 = scmp.lt.s32.totalorder %s41, 1
      %s1057 = scalar_select %p1056, %s41, 1
      %s1058 = scalar_lea.vmem %s8, %s1057
      %p1059 = scmp.lt.s32.totalorder %s41, 1
      %s1060 = scalar_select %p1059, %s41, 1
      %s1061 = smul.addr %s1060, 4
      %s1062 = smul.addr %s1061, 4
      %s1063 = scalar_lea.vmem %s9, %s1062
      %p1064 = scmp.lt.s32.totalorder %s41, 1
      %s1065 = scalar_select %p1064, %s41, 1
      %s1066 = scalar_lea.vmem %s10, %s1065
      %p1067 = scmp.lt.s32.totalorder %s41, 1
      %s1068 = scalar_select %p1067, %s41, 1
      %s1069 = smul.addr %s1068, 4
      %s1070 = smul.addr %s1069, 4
      %s1071 = scalar_lea.vmem %s11, %s1070
      %p1072 = scmp.lt.s32.totalorder %s41, 1
      %s1073 = scalar_select %p1072, %s41, 1
      %s1074 = scalar_lea.vmem %s12, %s1073
      %p1075 = scmp.lt.s32.totalorder %s41, 1
      %s1076 = scalar_select %p1075, %s41, 1
      %s1077 = smul.addr %s1076, 4
      %s1078 = smul.addr %s1077, 4
      %s1079 = scalar_lea.vmem %s13, %s1078
      %p1080 = scmp.lt.s32.totalorder %s41, 1
      %s1081 = scalar_select %p1080, %s41, 1
      %s1082 = scalar_lea.vmem %s14, %s1081
      %p1083 = scmp.lt.s32.totalorder %s41, 1
      %s1084 = scalar_select %p1083, %s41, 1
      %s1085 = scalar_lea.vmem %s15, %s1084
      %p1086 = scmp.lt.s32.totalorder %s41, 1
      %s1087 = scalar_select %p1086, %s41, 1
      %s1088 = scalar_lea.vmem %s16, %s1087
      %p1089 = scmp.lt.s32.totalorder %s41, 1
      %s1090 = scalar_select %p1089, %s41, 1
      %s1091 = smul.addr %s1090, 4
      %s1092 = smul.addr %s1091, 4
      %s1093 = scalar_lea.vmem %s17, %s1092
      %p1094 = scmp.lt.s32.totalorder %s41, 1
      %s1095 = scalar_select %p1094, %s41, 1
      %s1096 = scalar_lea.vmem %s18, %s1095
      %p1097 = scmp.lt.s32.totalorder %s41, 1
      %s1098 = scalar_select %p1097, %s41, 1
      %s1099 = smul.addr %s1098, 8
      %s1100 = smul.addr %s1099, 4
      %s1101 = scalar_lea.vmem %s19, %s1100
      %p1102 = scmp.lt.s32.totalorder %s41, 1
      %s1103 = scalar_select %p1102, %s41, 1
      %s1104 = scalar_lea.vmem %s20, %s1103
      %p1105 = scmp.lt.s32.totalorder %s41, 1
      %s1106 = scalar_select %p1105, %s41, 1
      %s1107 = scalar_lea.vmem %s21, %s1106
      %p1108 = scmp.lt.s32.totalorder %s41, 1
      %s1109 = scalar_select %p1108, %s41, 1
      %s1110 = scalar_lea.vmem %s22, %s1109
      %p1111 = scmp.lt.s32.totalorder %s40, 1
      %s1112 = scalar_select %p1111, %s40, 1
      %s1113 = smul.addr %s1112, 8
      %s1114 = scalar_lea.vmem %s23, %s1113
      %s1115 = smul.u32 4, %s40
      %p1116 = scmp.lt.s32.totalorder %s41, 1
      %s1117 = scalar_select %p1116, %s41, 1
      %p1118 = scmp.lt.s32.totalorder %s1115, 7
      %s1119 = scalar_select %p1118, %s1115, 7
      %s1120 = smul.addr %s1117, 8
      %s1121 = sadd.s32 %s1119, %s1120
      %s1122 = smul.addr %s1121, 8
      %s1123 = scalar_lea.vmem %s24, %s1122
      %s1124 = smul.u32 4, %s40
      %p1126 = scmp.eq.s32.totalorder %s41, 0
      // Predicated region
      $region113: #{decoder_forward.1} parent=111 // pred_check
        %p1127 = pneg %p1126
      $region114: #{decoder_forward.1} parent=111 // pred_check_branch
        %1129 = sbr.rel (%p1127) target = $region116
      $region115: #{decoder_forward.1} parent=111 // pred_region
        %v1130 = vld [vmem:[%s1028] sm:$0x7f]
        %vm1131 = vcmask 260096
        %1132 = vst.msk [vmem:[#allocation2] sm:$0x7f] %vm1131, %v1130
      $region116: #{decoder_forward.1} parent=111 // pred_fallthru
        _
      %v1133 = vld [vmem:[#allocation2] sm:$0x7f]
      %v1134 = vld [vmem:[%s1033] sm:$0xff]
      %v1135 = vld [vmem:[%s1033 + $0x8] sm:$0xff]
      %v1136 = vlaneseq
      %v1137 = vshrl.u32 %v1136, 7
      %v1138 = vlaneseq
      %v1139 = vand.u32 %v1138, 127
      %vm1140 = vcmp.gt.s32.totalorder %v1139, %v1137
      %v1141 = vsel %vm1140, -1e+30, 0.0
      %v1142 = vld [vmem:[%s1036] sm:$0x1]
      %v1144 = vperm.slane %v1142, 0
      %v1146 = vadd.f32 %v1141, %v1144
      %v1147 = vpack.c.bf16 %v1133, %v1133
      %v1148 = vld [vmem:[%s1041] sm:$0xf]
      %v1149 = vld [vmem:[%s1041 + $0x4] sm:$0xf]
      %v1150 = vld [vmem:[%s1041 + $0x8] sm:$0xf]
      %v1151 = vld [vmem:[%s1041 + $0xc] sm:$0xf]
      %v1152 = vld [vmem:[%s1044] sm:$0x1]
      %v1154 = vperm.slane %v1152, 0
      %v1160 = vunpack.c.l.b16 %v1148
      %v1161 = vunpack.c.l.b16 %v1149
      %v1162 = vunpack.c.l.b16 %v1150
      %v1163 = vunpack.c.l.b16 %v1151
      %v1164 = vpack.c.b16 %v1161, %v1160
      %v1165 = vpack.c.b16 %v1163, %v1162
      %vm1168 = vcmask 261120
      %v1170 = vsel %vm1168, %v1147, 0
      %1172 = vmatpush.bf16.msra.mxu0 0
      %1173 = vmatpush.bf16.msra.mxu0 0
      %1174 = vmatpush.bf16.msra.mxu0 0
      %1175 = vmatpush.bf16.msra.mxu0 0
      %1176 = vmatpush.bf16.msra.mxu0 0
      %1177 = vmatpush.bf16.msra.mxu0 0
      %1178 = vmatpush.bf16.msra.mxu0 %v1165
      %1179 = vmatpush.bf16.msra.mxu0 %v1164
      %1180 = vmatmul.bf16.gmra.mxu0 %v1170
      %v1181 = vpop.f32.mrf.mxu0
      %v1182 = vadd.f32 %v1154, %v1181
      %v1183 = vpop.f32.mrf.mxu0
      %1184 = vdwg.mxu0
      %v1185 = vpack.c.bf16 %v1182, %v1182
      %v1187 = vunpack.c.l.b16 %v1185
      %v1188 = vpack.c.b16 %v1187, %v1187
      %1189 = vrot.lane.b32.xlu0 %v1188, 96
      %v1190 = vpop.permute.xlu0 %1189
      %vm1191 = vcmask 64512
      %v1193 = vsel %vm1191, %v1185, 0
      %v1196 = vsel %vm1191, %v1190, 0
      %1198 = vmatpush.bf16.xpose.msra.mxu0 0
      %1199 = vmatpush.bf16.xpose.msra.mxu0 0
      %1200 = vmatpush.bf16.xpose.msra.mxu0 0
      %1201 = vmatpush.bf16.xpose.msra.mxu0 0
      %1202 = vmatpush.bf16.xpose.msra.mxu0 0
      %1203 = vmatpush.bf16.xpose.msra.mxu0 0
      %1204 = vmatpush.bf16.xpose.msra.mxu0 0
      %1205 = vmatpush.bf16.xpose.msra.mxu0 %v1196
      %1206 = vmatmul.bf16.gmra.mxu0 %v1193
      %v1207 = vpop.f32.mrf.mxu0
      %v1208 = vadd.f32 %v1146, %v1207
      %v1209 = vpop.f32.mrf.mxu0
      %1210 = vdwg.mxu0
      %vm1211 = vcmask 55296
      %v1212 = vsel %vm1211, %v1208, -inf
      %1213 = vmax.xlane.f32.xlu0 %v1212
      %v1214 = vpop.xlane.xlu0 %1213
      %v1215 = vsub.f32 %v1208, %v1214
      %v1216 = vmul.f32 %v1215, 1.442695
      %v1217 = vpow.pop %v1216
      %v1218 = vsel %vm1211, %v1217, 0.0
      %1219 = vadd.xlane.f32.xlu0 %v1218
      %v1220 = vpop.xlane.xlu0 %1219
      %v1221 = vrcp.pop %v1220
      %v1222 = vmul.f32 %v1217, %v1221
      %v1223 = vpack.c.bf16 %v1222, %v1222
      %1224 = vrot.lane.b32.xlu0 %v1188, 64
      %v1225 = vpop.permute.xlu0 %1224
      %vm1226 = vcmask 56320
      %v1228 = vsel %vm1226, %v1223, 0
      %vm1230 = vcmask 1042432
      %vm1231 = vcmask 1043456
      %v1232 = vsel %vm1230, 4294967295, 65535
      %v1233 = vsel %vm1231, %v1232, 0
      %v1235 = vand.u32 %v1225, %v1233
      %1237 = vmatpush.bf16.msra.mxu0 0
      %1238 = vmatpush.bf16.msra.mxu0 0
      %1239 = vmatpush.bf16.msra.mxu0 0
      %1240 = vmatpush.bf16.msra.mxu0 0
      %1241 = vmatpush.bf16.msra.mxu0 0
      %1242 = vmatpush.bf16.msra.mxu0 0
      %1243 = vmatpush.bf16.msra.mxu0 0
      %1244 = vmatpush.bf16.msra.mxu0 %v1235
      %1245 = vmatmul.bf16.gmra.mxu0 %v1228
      %v1246 = vpop.f32.mrf.mxu0
      %v1247 = vadd.f32 0.0, %v1246
      %v1248 = vpop.f32.mrf.mxu0
      %1249 = vdwg.mxu0
      %1250 = vrot.lane.b32.xlu0 %v1188, 120
      %v1251 = vpop.permute.xlu0 %1250
      %1252 = vrot.lane.b32.xlu0 %v1188, 88
      %v1253 = vpop.permute.xlu0 %1252
      %v1255 = vsel %vm1191, %v1251, 0
      %v1258 = vsel %vm1191, %v1253, 0
      %1260 = vmatpush.bf16.xpose.msra.mxu0 0
      %1261 = vmatpush.bf16.xpose.msra.mxu0 0
      %1262 = vmatpush.bf16.xpose.msra.mxu0 0
      %1263 = vmatpush.bf16.xpose.msra.mxu0 0
      %1264 = vmatpush.bf16.xpose.msra.mxu0 0
      %1265 = vmatpush.bf16.xpose.msra.mxu0 0
      %1266 = vmatpush.bf16.xpose.msra.mxu0 0
      %1267 = vmatpush.bf16.xpose.msra.mxu0 %v1258
      %1268 = vmatmul.bf16.gmra.mxu0 %v1255
      %v1269 = vpop.f32.mrf.mxu0
      %v1270 = vadd.f32 %v1146, %v1269
      %v1271 = vpop.f32.mrf.mxu0
      %1272 = vdwg.mxu0
      %v1273 = vsel %vm1211, %v1270, -inf
      %1274 = vmax.xlane.f32.xlu0 %v1273
      %v1275 = vpop.xlane.xlu0 %1274
      %v1276 = vsub.f32 %v1270, %v1275
      %v1277 = vmul.f32 %v1276, 1.442695
      %v1278 = vpow.pop %v1277
      %v1279 = vsel %vm1211, %v1278, 0.0
      %1280 = vadd.xlane.f32.xlu0 %v1279
      %v1281 = vpop.xlane.xlu0 %1280
      %v1282 = vrcp.pop %v1281
      %v1283 = vmul.f32 %v1278, %v1282
      %v1284 = vpack.c.bf16 %v1283, %v1283
      %1285 = vrot.lane.b32.xlu0 %v1188, 56
      %v1286 = vpop.permute.xlu0 %1285
      %v1288 = vsel %vm1226, %v1284, 0
      %v1291 = vand.u32 %v1286, %v1233
      %1293 = vmatpush.bf16.msra.mxu0 0
      %1294 = vmatpush.bf16.msra.mxu0 0
      %1295 = vmatpush.bf16.msra.mxu0 0
      %1296 = vmatpush.bf16.msra.mxu0 0
      %1297 = vmatpush.bf16.msra.mxu0 0
      %1298 = vmatpush.bf16.msra.mxu0 0
      %1299 = vmatpush.bf16.msra.mxu0 0
      %1300 = vmatpush.bf16.msra.mxu0 %v1291
      %1301 = vmatmul.bf16.gmra.mxu0 %v1288
      %v1302 = vpop.f32.mrf.mxu0
      %v1303 = vadd.f32 0.0, %v1302
      %v1304 = vpop.f32.mrf.mxu0
      %1305 = vdwg.mxu0
      %1306 = vrot.lane.b32.xlu0 %v1188, 112
      %v1307 = vpop.permute.xlu0 %1306
      %1308 = vrot.lane.b32.xlu0 %v1188, 80
      %v1309 = vpop.permute.xlu0 %1308
      %v1311 = vsel %vm1191, %v1307, 0
      %v1314 = vsel %vm1191, %v1309, 0
      %1316 = vmatpush.bf16.xpose.msra.mxu0 0
      %1317 = vmatpush.bf16.xpose.msra.mxu0 0
      %1318 = vmatpush.bf16.xpose.msra.mxu0 0
      %1319 = vmatpush.bf16.xpose.msra.mxu0 0
      %1320 = vmatpush.bf16.xpose.msra.mxu0 0
      %1321 = vmatpush.bf16.xpose.msra.mxu0 0
      %1322 = vmatpush.bf16.xpose.msra.mxu0 0
      %1323 = vmatpush.bf16.xpose.msra.mxu0 %v1314
      %1324 = vmatmul.bf16.gmra.mxu0 %v1311
      %v1325 = vpop.f32.mrf.mxu0
      %v1326 = vadd.f32 %v1146, %v1325
      %v1327 = vpop.f32.mrf.mxu0
      %1328 = vdwg.mxu0
      %v1329 = vsel %vm1211, %v1326, -inf
      %1330 = vmax.xlane.f32.xlu0 %v1329
      %v1331 = vpop.xlane.xlu0 %1330
      %v1332 = vsub.f32 %v1326, %v1331
      %v1333 = vmul.f32 %v1332, 1.442695
      %v1334 = vpow.pop %v1333
      %v1335 = vsel %vm1211, %v1334, 0.0
      %1336 = vadd.xlane.f32.xlu0 %v1335
      %v1337 = vpop.xlane.xlu0 %1336
      %v1338 = vrcp.pop %v1337
      %v1339 = vmul.f32 %v1334, %v1338
      %v1340 = vpack.c.bf16 %v1339, %v1339
      %1341 = vrot.lane.b32.xlu0 %v1188, 48
      %v1342 = vpop.permute.xlu0 %1341
      %v1344 = vsel %vm1226, %v1340, 0
      %v1347 = vand.u32 %v1342, %v1233
      %1349 = vmatpush.bf16.msra.mxu0 0
      %1350 = vmatpush.bf16.msra.mxu0 0
      %1351 = vmatpush.bf16.msra.mxu0 0
      %1352 = vmatpush.bf16.msra.mxu0 0
      %1353 = vmatpush.bf16.msra.mxu0 0
      %1354 = vmatpush.bf16.msra.mxu0 0
      %1355 = vmatpush.bf16.msra.mxu0 0
      %1356 = vmatpush.bf16.msra.mxu0 %v1347
      %1357 = vmatmul.bf16.gmra.mxu0 %v1344
      %v1358 = vpop.f32.mrf.mxu0
      %v1359 = vadd.f32 0.0, %v1358
      %v1360 = vpop.f32.mrf.mxu0
      %1361 = vdwg.mxu0
      %1362 = vrot.lane.b32.xlu0 %v1188, 104
      %v1363 = vpop.permute.xlu0 %1362
      %1364 = vrot.lane.b32.xlu0 %v1188, 72
      %v1365 = vpop.permute.xlu0 %1364
      %v1367 = vsel %vm1191, %v1363, 0
      %v1370 = vsel %vm1191, %v1365, 0
      %1372 = vmatpush.bf16.xpose.msra.mxu0 0
      %1373 = vmatpush.bf16.xpose.msra.mxu0 0
      %1374 = vmatpush.bf16.xpose.msra.mxu0 0
      %1375 = vmatpush.bf16.xpose.msra.mxu0 0
      %1376 = vmatpush.bf16.xpose.msra.mxu0 0
      %1377 = vmatpush.bf16.xpose.msra.mxu0 0
      %1378 = vmatpush.bf16.xpose.msra.mxu0 0
      %1379 = vmatpush.bf16.xpose.msra.mxu0 %v1370
      %1380 = vmatmul.bf16.gmra.mxu0 %v1367
      %v1381 = vpop.f32.mrf.mxu0
      %v1382 = vadd.f32 %v1146, %v1381
      %v1383 = vpop.f32.mrf.mxu0
      %1384 = vdwg.mxu0
      %v1385 = vsel %vm1211, %v1382, -inf
      %1386 = vmax.xlane.f32.xlu0 %v1385
      %v1387 = vpop.xlane.xlu0 %1386
      %v1388 = vsub.f32 %v1382, %v1387
      %v1389 = vmul.f32 %v1388, 1.442695
      %v1390 = vpow.pop %v1389
      %v1391 = vsel %vm1211, %v1390, 0.0
      %1392 = vadd.xlane.f32.xlu0 %v1391
      %v1393 = vpop.xlane.xlu0 %1392
      %v1394 = vrcp.pop %v1393
      %v1395 = vmul.f32 %v1390, %v1394
      %v1396 = vpack.c.bf16 %v1395, %v1395
      %1397 = vrot.lane.b32.xlu0 %v1188, 40
      %v1398 = vpop.permute.xlu0 %1397
      %v1400 = vsel %vm1226, %v1396, 0
      %v1403 = vand.u32 %v1398, %v1233
      %1405 = vmatpush.bf16.msra.mxu0 0
      %1406 = vmatpush.bf16.msra.mxu0 0
      %1407 = vmatpush.bf16.msra.mxu0 0
      %1408 = vmatpush.bf16.msra.mxu0 0
      %1409 = vmatpush.bf16.msra.mxu0 0
      %1410 = vmatpush.bf16.msra.mxu0 0
      %1411 = vmatpush.bf16.msra.mxu0 0
      %1412 = vmatpush.bf16.msra.mxu0 %v1403
      %1413 = vmatmul.bf16.gmra.mxu0 %v1400
      %v1414 = vpop.f32.mrf.mxu0
      %v1415 = vadd.f32 0.0, %v1414
      %v1416 = vpop.f32.mrf.mxu0
      %1417 = vdwg.mxu0
      %1419 = vrot.lane.b32.xlu0 %v1303, 8
      %v1420 = vpop.permute.xlu0 %1419
      %1423 = vrot.lane.b32.xlu0 %v1359, 16
      %v1424 = vpop.permute.xlu0 %1423
      %1427 = vrot.lane.b32.xlu0 %v1415, 24
      %v1428 = vpop.permute.xlu0 %1427
      %v1430 = vsel %vm1191, %v1247, %v1420
      %vm1431 = vcmask 130048
      %v1432 = vsel %vm1431, %v1430, %v1424
      %vm1433 = vcmask 195584
      %v1434 = vsel %vm1433, %v1432, %v1428
      %v1435 = vpack.c.bf16 %v1434, %v1434
      %v1436 = vld [vmem:[%s1049] sm:$0xf]
      %v1437 = vld [vmem:[%s1049 + $0x4] sm:$0xf]
      %v1438 = vld [vmem:[%s1049 + $0x8] sm:$0xf]
      %v1439 = vld [vmem:[%s1049 + $0xc] sm:$0xf]
      %v1440 = vld [vmem:[%s1052] sm:$0x1]
      %v1442 = vperm.slane %v1440, 0
      %v1448 = vunpack.c.l.b16 %v1436
      %v1449 = vunpack.c.l.b16 %v1437
      %v1450 = vunpack.c.l.b16 %v1438
      %v1451 = vunpack.c.l.b16 %v1439
      %v1452 = vpack.c.b16 %v1449, %v1448
      %v1453 = vpack.c.b16 %v1451, %v1450
      %v1457 = vsel %vm1168, %v1435, 0
      %1459 = vmatpush.bf16.msra.mxu0 0
      %1460 = vmatpush.bf16.msra.mxu0 0
      %1461 = vmatpush.bf16.msra.mxu0 0
      %1462 = vmatpush.bf16.msra.mxu0 0
      %1463 = vmatpush.bf16.msra.mxu0 0
      %1464 = vmatpush.bf16.msra.mxu0 0
      %1465 = vmatpush.bf16.msra.mxu0 %v1453
      %1466 = vmatpush.bf16.msra.mxu0 %v1452
      %1467 = vmatmul.bf16.gmra.mxu0 %v1457
      %v1468 = vpop.f32.mrf.mxu0
      %v1469 = vadd.f32 %v1442, %v1468
      %v1470 = vpop.f32.mrf.mxu0
      %1471 = vdwg.mxu0
      %v1472 = vadd.f32 %v1133, %v1469
      %v1473 = vld [vmem:[%s1055] sm:$0x1]
      %v1474 = vld [vmem:[%s1058] sm:$0x1]
      %vm1475 = vcmask 260096
      %v1476 = vsel %vm1475, %v1472, 0.0
      %1477 = vadd.xlane.f32.xlu0 %v1476
      %v1478 = vpop.xlane.xlu0 %1477
      %v1479 = vrcp.pop 32.0
      %v1480 = vmul.f32 32.0, %v1479
      %v1481 = vsub.f32 1.0, %v1480
      %v1482 = vmul.f32 %v1479, %v1481
      %v1483 = vadd.f32 %v1479, %v1482
      %vm1484 = vweird.f32 %v1479
      %v1485 = vsel %vm1484, %v1479, %v1483
      %v1486 = vmul.f32 %v1478, %v1485
      %v1487 = vsub.f32 %v1472, %v1486
      %v1488 = vmul.f32 %v1487, %v1487
      %v1489 = vsel %vm1475, %v1488, 0.0
      %1490 = vadd.xlane.f32.xlu0 %v1489
      %v1491 = vpop.xlane.xlu0 %1490
      %v1492 = vmul.f32 %v1491, %v1485
      %v1493 = vadd.f32 %v1492, 1e-05
      %v1494 = vrsqrt.pop %v1493
      %v1495 = vmul.f32 %v1494, %v1493
      %v1496 = vmul.f32 %v1495, %v1494
      %v1497 = vmul.f32 0.5, %v1496
      %v1498 = vsub.f32 1.5, %v1497
      %v1499 = vmul.f32 %v1494, %v1498
      %vm1500 = vweird.f32 %v1493
      %vm1501 = vweird.f32 %v1494
      %vm1502 = vmor %vm1500, %vm1501
      %v1503 = vsel %vm1502, %v1494, %v1499
      %v1504 = vmul.f32 %v1487, %v1503
      %v1506 = vperm.slane %v1473, 0
      %v1508 = vmul.f32 %v1504, %v1506
      %v1510 = vperm.slane %v1474, 0
      %v1512 = vadd.f32 %v1508, %v1510
      %v1513 = vpack.c.bf16 %v1512, %v1512
      %v1514 = vld [vmem:[%s1063] sm:$0xf]
      %v1515 = vld [vmem:[%s1063 + $0x4] sm:$0xf]
      %v1516 = vld [vmem:[%s1063 + $0x8] sm:$0xf]
      %v1517 = vld [vmem:[%s1063 + $0xc] sm:$0xf]
      %v1518 = vld [vmem:[%s1066] sm:$0x1]
      %v1520 = vperm.slane %v1518, 0
      %v1526 = vunpack.c.l.b16 %v1514
      %v1527 = vunpack.c.l.b16 %v1515
      %v1528 = vunpack.c.l.b16 %v1516
      %v1529 = vunpack.c.l.b16 %v1517
      %v1530 = vpack.c.b16 %v1527, %v1526
      %v1531 = vpack.c.b16 %v1529, %v1528
      %v1535 = vsel %vm1168, %v1513, 0
      %1537 = vmatpush.bf16.msra.mxu0 0
      %1538 = vmatpush.bf16.msra.mxu0 0
      %1539 = vmatpush.bf16.msra.mxu0 0
      %1540 = vmatpush.bf16.msra.mxu0 0
      %1541 = vmatpush.bf16.msra.mxu0 0
      %1542 = vmatpush.bf16.msra.mxu0 0
      %1543 = vmatpush.bf16.msra.mxu0 %v1531
      %1544 = vmatpush.bf16.msra.mxu0 %v1530
      %1545 = vmatmul.bf16.gmra.mxu0 %v1535
      %v1546 = vpop.f32.mrf.mxu0
      %v1547 = vadd.f32 %v1520, %v1546
      %v1548 = vpop.f32.mrf.mxu0
      %1549 = vdwg.mxu0
      %v1550 = vpack.c.bf16 %v1547, %v1547
      %v1551 = vpack.c.bf16 %v1135, %v1134
      %v1552 = vld [vmem:[%s1071] sm:$0xf]
      %v1553 = vld [vmem:[%s1071 + $0x4] sm:$0xf]
      %v1554 = vld [vmem:[%s1071 + $0x8] sm:$0xf]
      %v1555 = vld [vmem:[%s1071 + $0xc] sm:$0xf]
      %v1556 = vld [vmem:[%s1074] sm:$0x1]
      %v1558 = vperm.slane %v1556, 0
      %v1564 = vunpack.c.l.b16 %v1552
      %v1565 = vunpack.c.l.b16 %v1553
      %v1566 = vunpack.c.l.b16 %v1554
      %v1567 = vunpack.c.l.b16 %v1555
      %v1568 = vpack.c.b16 %v1565, %v1564
      %v1569 = vpack.c.b16 %v1567, %v1566
      %v1573 = vsel %vm1168, %v1551, 0
      %1575 = vmatpush.bf16.msra.mxu0 0
      %1576 = vmatpush.bf16.msra.mxu0 0
      %1577 = vmatpush.bf16.msra.mxu0 0
      %1578 = vmatpush.bf16.msra.mxu0 0
      %1579 = vmatpush.bf16.msra.mxu0 0
      %1580 = vmatpush.bf16.msra.mxu0 0
      %1581 = vmatpush.bf16.msra.mxu0 %v1569
      %1582 = vmatpush.bf16.msra.mxu0 %v1568
      %1583 = vmatmul.bf16.gmra.mxu0 %v1573
      %v1584 = vpop.f32.mrf.mxu0
      %v1585 = vadd.f32 %v1558, %v1584
      %v1586 = vpop.f32.mrf.mxu0
      %v1587 = vadd.f32 %v1558, %v1586
      %1588 = vdwg.mxu0
      %v1589 = vpack.c.bf16 %v1585, %v1585
      %v1590 = vpack.c.bf16 %v1587, %v1587
      %v1593 = vunpack.c.l.b16 %v1589
      %v1594 = vunpack.c.l.b16 %v1590
      %v1595 = vpack.c.b16 %v1594, %v1593
      %v1597 = vsel %vm1191, %v1550, 0
      %v1600 = vsel %vm1191, %v1595, 0
      %1602 = vmatpush.bf16.xpose.msra.mxu0 0
      %1603 = vmatpush.bf16.xpose.msra.mxu0 0
      %1604 = vmatpush.bf16.xpose.msra.mxu0 0
      %1605 = vmatpush.bf16.xpose.msra.mxu0 0
      %1606 = vmatpush.bf16.xpose.msra.mxu0 0
      %1607 = vmatpush.bf16.xpose.msra.mxu0 0
      %1608 = vmatpush.bf16.xpose.msra.mxu0 0
      %1609 = vmatpush.bf16.xpose.msra.mxu0 %v1600
      %1610 = vmatmul.bf16.gmra.mxu0 %v1597
      %v1611 = vpop.f32.mrf.mxu0
      %v1612 = vadd.f32 0.0, %v1611
      %v1613 = vpop.f32.mrf.mxu0
      %1614 = vdwg.mxu0
      %vm1615 = vcmask 129024
      %v1616 = vsel %vm1615, %v1612, -inf
      %1617 = vmax.xlane.f32.xlu0 %v1616
      %v1618 = vpop.xlane.xlu0 %1617
      %v1619 = vsub.f32 %v1612, %v1618
      %v1620 = vmul.f32 %v1619, 1.442695
      %v1621 = vpow.pop %v1620
      %v1622 = vsel %vm1615, %v1621, 0.0
      %1623 = vadd.xlane.f32.xlu0 %v1622
      %v1624 = vpop.xlane.xlu0 %1623
      %v1625 = vrcp.pop %v1624
      %v1626 = vmul.f32 %v1624, %v1625
      %v1627 = vsub.f32 1.0, %v1626
      %v1628 = vmul.f32 %v1625, %v1627
      %v1629 = vadd.f32 %v1625, %v1628
      %vm1630 = vweird.f32 %v1624
      %vm1631 = vweird.f32 %v1625
      %vm1632 = vmor %vm1630, %vm1631
      %v1633 = vsel %vm1632, %v1625, %v1629
      %v1634 = vand.u32 2147483647, %v1624
      %vm1635 = vcmp.eq.f32.partialorder %v1634, 8.507059e+37
      %v1636 = vand.u32 %v1624, 2147483648
      %v1637 = vor.u32 1.1754944e-38, %v1636
      %v1638 = vsel %vm1635, %v1637, %v1633
      %v1639 = vmul.f32 %v1621, %v1638
      %1640 = vst.msk [vmem:[%s1123] sm:$0x7f] %vm1615, %v1639
      %v1641 = vpack.c.bf16 %v1639, %v1639
      %1642 = vrot.lane.b32.xlu0 %v1595, 96
      %v1643 = vpop.permute.xlu0 %1642
      %v1646 = vsel %vm1431, %v1641, 0
      %1648 = vmatpush.bf16.msra.mxu0 0
      %1649 = vmatpush.bf16.msra.mxu0 0
      %1650 = vmatpush.bf16.msra.mxu0 0
      %1651 = vmatpush.bf16.msra.mxu0 0
      %1652 = vmatpush.bf16.msra.mxu0 0
      %1653 = vmatpush.bf16.msra.mxu0 0
      %1654 = vmatpush.bf16.msra.mxu0 0
      %1655 = vmatpush.bf16.msra.mxu0 %v1643
      %1656 = vmatmul.bf16.gmra.mxu0 %v1646
      %v1657 = vpop.f32.mrf.mxu0
      %v1658 = vadd.f32 0.0, %v1657
      %v1659 = vpop.f32.mrf.mxu0
      %1660 = vdwg.mxu0
      %v1662 = vunpack.c.l.b16 %v1550
      %v1663 = vpack.c.b16 %v1662, %v1662
      %1664 = vrot.lane.b32.xlu0 %v1663, 120
      %v1665 = vpop.permute.xlu0 %1664
      %1666 = vrot.lane.b32.xlu0 %v1595, 120
      %v1667 = vpop.permute.xlu0 %1666
      %v1669 = vsel %vm1191, %v1665, 0
      %v1672 = vsel %vm1191, %v1667, 0
      %1674 = vmatpush.bf16.xpose.msra.mxu0 0
      %1675 = vmatpush.bf16.xpose.msra.mxu0 0
      %1676 = vmatpush.bf16.xpose.msra.mxu0 0
      %1677 = vmatpush.bf16.xpose.msra.mxu0 0
      %1678 = vmatpush.bf16.xpose.msra.mxu0 0
      %1679 = vmatpush.bf16.xpose.msra.mxu0 0
      %1680 = vmatpush.bf16.xpose.msra.mxu0 0
      %1681 = vmatpush.bf16.xpose.msra.mxu0 %v1672
      %1682 = vmatmul.bf16.gmra.mxu0 %v1669
      %v1683 = vpop.f32.mrf.mxu0
      %v1684 = vadd.f32 0.0, %v1683
      %v1685 = vpop.f32.mrf.mxu0
      %1686 = vdwg.mxu0
      %v1687 = vsel %vm1615, %v1684, -inf
      %1688 = vmax.xlane.f32.xlu0 %v1687
      %v1689 = vpop.xlane.xlu0 %1688
      %v1690 = vsub.f32 %v1684, %v1689
      %v1691 = vmul.f32 %v1690, 1.442695
      %v1692 = vpow.pop %v1691
      %v1693 = vsel %vm1615, %v1692, 0.0
      %1694 = vadd.xlane.f32.xlu0 %v1693
      %v1695 = vpop.xlane.xlu0 %1694
      %v1696 = vrcp.pop %v1695
      %v1697 = vmul.f32 %v1695, %v1696
      %v1698 = vsub.f32 1.0, %v1697
      %v1699 = vmul.f32 %v1696, %v1698
      %v1700 = vadd.f32 %v1696, %v1699
      %vm1701 = vweird.f32 %v1695
      %vm1702 = vweird.f32 %v1696
      %vm1703 = vmor %vm1701, %vm1702
      %v1704 = vsel %vm1703, %v1696, %v1700
      %v1705 = vand.u32 2147483647, %v1695
      %vm1706 = vcmp.eq.f32.partialorder %v1705, 8.507059e+37
      %v1707 = vand.u32 %v1695, 2147483648
      %v1708 = vor.u32 1.1754944e-38, %v1707
      %v1709 = vsel %vm1706, %v1708, %v1704
      %v1710 = vmul.f32 %v1692, %v1709
      %s1711 = scalar_lea.vmem %s1123, 8
      %1712 = vst.msk [vmem:[%s1711] sm:$0x7f] %vm1615, %v1710
      %v1713 = vpack.c.bf16 %v1710, %v1710
      %1714 = vrot.lane.b32.xlu0 %v1595, 88
      %v1715 = vpop.permute.xlu0 %1714
      %v1718 = vsel %vm1431, %v1713, 0
      %1720 = vmatpush.bf16.msra.mxu0 0
      %1721 = vmatpush.bf16.msra.mxu0 0
      %1722 = vmatpush.bf16.msra.mxu0 0
      %1723 = vmatpush.bf16.msra.mxu0 0
      %1724 = vmatpush.bf16.msra.mxu0 0
      %1725 = vmatpush.bf16.msra.mxu0 0
      %1726 = vmatpush.bf16.msra.mxu0 0
      %1727 = vmatpush.bf16.msra.mxu0 %v1715
      %1728 = vmatmul.bf16.gmra.mxu0 %v1718
      %v1729 = vpop.f32.mrf.mxu0
      %v1730 = vadd.f32 0.0, %v1729
      %v1731 = vpop.f32.mrf.mxu0
      %1732 = vdwg.mxu0
      %1733 = vrot.lane.b32.xlu0 %v1663, 112
      %v1734 = vpop.permute.xlu0 %1733
      %1735 = vrot.lane.b32.xlu0 %v1595, 112
      %v1736 = vpop.permute.xlu0 %1735
      %v1738 = vsel %vm1191, %v1734, 0
      %v1741 = vsel %vm1191, %v1736, 0
      %1743 = vmatpush.bf16.xpose.msra.mxu0 0
      %1744 = vmatpush.bf16.xpose.msra.mxu0 0
      %1745 = vmatpush.bf16.xpose.msra.mxu0 0
      %1746 = vmatpush.bf16.xpose.msra.mxu0 0
      %1747 = vmatpush.bf16.xpose.msra.mxu0 0
      %1748 = vmatpush.bf16.xpose.msra.mxu0 0
      %1749 = vmatpush.bf16.xpose.msra.mxu0 0
      %1750 = vmatpush.bf16.xpose.msra.mxu0 %v1741
      %1751 = vmatmul.bf16.gmra.mxu0 %v1738
      %v1752 = vpop.f32.mrf.mxu0
      %v1753 = vadd.f32 0.0, %v1752
      %v1754 = vpop.f32.mrf.mxu0
      %1755 = vdwg.mxu0
      %v1756 = vsel %vm1615, %v1753, -inf
      %1757 = vmax.xlane.f32.xlu0 %v1756
      %v1758 = vpop.xlane.xlu0 %1757
      %v1759 = vsub.f32 %v1753, %v1758
      %v1760 = vmul.f32 %v1759, 1.442695
      %v1761 = vpow.pop %v1760
      %v1762 = vsel %vm1615, %v1761, 0.0
      %1763 = vadd.xlane.f32.xlu0 %v1762
      %v1764 = vpop.xlane.xlu0 %1763
      %v1765 = vrcp.pop %v1764
      %v1766 = vmul.f32 %v1764, %v1765
      %v1767 = vsub.f32 1.0, %v1766
      %v1768 = vmul.f32 %v1765, %v1767
      %v1769 = vadd.f32 %v1765, %v1768
      %vm1770 = vweird.f32 %v1764
      %vm1771 = vweird.f32 %v1765
      %vm1772 = vmor %vm1770, %vm1771
      %v1773 = vsel %vm1772, %v1765, %v1769
      %v1774 = vand.u32 2147483647, %v1764
      %vm1775 = vcmp.eq.f32.partialorder %v1774, 8.507059e+37
      %v1776 = vand.u32 %v1764, 2147483648
      %v1777 = vor.u32 1.1754944e-38, %v1776
      %v1778 = vsel %vm1775, %v1777, %v1773
      %v1779 = vmul.f32 %v1761, %v1778
      %s1780 = scalar_lea.vmem %s1123, 16
      %1781 = vst.msk [vmem:[%s1780] sm:$0x7f] %vm1615, %v1779
      %v1782 = vpack.c.bf16 %v1779, %v1779
      %1783 = vrot.lane.b32.xlu0 %v1595, 80
      %v1784 = vpop.permute.xlu0 %1783
      %v1787 = vsel %vm1431, %v1782, 0
      %1789 = vmatpush.bf16.msra.mxu0 0
      %1790 = vmatpush.bf16.msra.mxu0 0
      %1791 = vmatpush.bf16.msra.mxu0 0
      %1792 = vmatpush.bf16.msra.mxu0 0
      %1793 = vmatpush.bf16.msra.mxu0 0
      %1794 = vmatpush.bf16.msra.mxu0 0
      %1795 = vmatpush.bf16.msra.mxu0 0
      %1796 = vmatpush.bf16.msra.mxu0 %v1784
      %1797 = vmatmul.bf16.gmra.mxu0 %v1787
      %v1798 = vpop.f32.mrf.mxu0
      %v1799 = vadd.f32 0.0, %v1798
      %v1800 = vpop.f32.mrf.mxu0
      %1801 = vdwg.mxu0
      %1802 = vrot.lane.b32.xlu0 %v1663, 104
      %v1803 = vpop.permute.xlu0 %1802
      %1804 = vrot.lane.b32.xlu0 %v1595, 104
      %v1805 = vpop.permute.xlu0 %1804
      %v1807 = vsel %vm1191, %v1803, 0
      %v1810 = vsel %vm1191, %v1805, 0
      %1812 = vmatpush.bf16.xpose.msra.mxu0 0
      %1813 = vmatpush.bf16.xpose.msra.mxu0 0
      %1814 = vmatpush.bf16.xpose.msra.mxu0 0
      %1815 = vmatpush.bf16.xpose.msra.mxu0 0
      %1816 = vmatpush.bf16.xpose.msra.mxu0 0
      %1817 = vmatpush.bf16.xpose.msra.mxu0 0
      %1818 = vmatpush.bf16.xpose.msra.mxu0 0
      %1819 = vmatpush.bf16.xpose.msra.mxu0 %v1810
      %1820 = vmatmul.bf16.gmra.mxu0 %v1807
      %v1821 = vpop.f32.mrf.mxu0
      %v1822 = vadd.f32 0.0, %v1821
      %v1823 = vpop.f32.mrf.mxu0
      %1824 = vdwg.mxu0
      %v1825 = vsel %vm1615, %v1822, -inf
      %1826 = vmax.xlane.f32.xlu0 %v1825
      %v1827 = vpop.xlane.xlu0 %1826
      %v1828 = vsub.f32 %v1822, %v1827
      %v1829 = vmul.f32 %v1828, 1.442695
      %v1830 = vpow.pop %v1829
      %v1831 = vsel %vm1615, %v1830, 0.0
      %1832 = vadd.xlane.f32.xlu0 %v1831
      %v1833 = vpop.xlane.xlu0 %1832
      %v1834 = vrcp.pop %v1833
      %v1835 = vmul.f32 %v1833, %v1834
      %v1836 = vsub.f32 1.0, %v1835
      %v1837 = vmul.f32 %v1834, %v1836
      %v1838 = vadd.f32 %v1834, %v1837
      %vm1839 = vweird.f32 %v1833
      %vm1840 = vweird.f32 %v1834
      %vm1841 = vmor %vm1839, %vm1840
      %v1842 = vsel %vm1841, %v1834, %v1838
      %v1843 = vand.u32 2147483647, %v1833
      %vm1844 = vcmp.eq.f32.partialorder %v1843, 8.507059e+37
      %v1845 = vand.u32 %v1833, 2147483648
      %v1846 = vor.u32 1.1754944e-38, %v1845
      %v1847 = vsel %vm1844, %v1846, %v1842
      %v1848 = vmul.f32 %v1830, %v1847
      %s1849 = scalar_lea.vmem %s1123, 24
      %1850 = vst.msk [vmem:[%s1849] sm:$0x7f] %vm1615, %v1848
      %v1851 = vpack.c.bf16 %v1848, %v1848
      %1852 = vrot.lane.b32.xlu0 %v1595, 72
      %v1853 = vpop.permute.xlu0 %1852
      %v1856 = vsel %vm1431, %v1851, 0
      %1858 = vmatpush.bf16.msra.mxu0 0
      %1859 = vmatpush.bf16.msra.mxu0 0
      %1860 = vmatpush.bf16.msra.mxu0 0
      %1861 = vmatpush.bf16.msra.mxu0 0
      %1862 = vmatpush.bf16.msra.mxu0 0
      %1863 = vmatpush.bf16.msra.mxu0 0
      %1864 = vmatpush.bf16.msra.mxu0 0
      %1865 = vmatpush.bf16.msra.mxu0 %v1853
      %1866 = vmatmul.bf16.gmra.mxu0 %v1856
      %v1867 = vpop.f32.mrf.mxu0
      %v1868 = vadd.f32 0.0, %v1867
      %v1869 = vpop.f32.mrf.mxu0
      %1870 = vdwg.mxu0
      %1872 = vrot.lane.b32.xlu0 %v1730, 8
      %v1873 = vpop.permute.xlu0 %1872
      %1876 = vrot.lane.b32.xlu0 %v1799, 16
      %v1877 = vpop.permute.xlu0 %1876
      %1880 = vrot.lane.b32.xlu0 %v1868, 24
      %v1881 = vpop.permute.xlu0 %1880
      %v1883 = vsel %vm1191, %v1658, %v1873
      %v1884 = vsel %vm1431, %v1883, %v1877
      %v1885 = vsel %vm1433, %v1884, %v1881
      %v1886 = vpack.c.bf16 %v1885, %v1885
      %v1887 = vld [vmem:[%s1079] sm:$0xf]
      %v1888 = vld [vmem:[%s1079 + $0x4] sm:$0xf]
      %v1889 = vld [vmem:[%s1079 + $0x8] sm:$0xf]
      %v1890 = vld [vmem:[%s1079 + $0xc] sm:$0xf]
      %v1891 = vld [vmem:[%s1082] sm:$0x1]
      %v1893 = vperm.slane %v1891, 0
      %v1899 = vunpack.c.l.b16 %v1887
      %v1900 = vunpack.c.l.b16 %v1888
      %v1901 = vunpack.c.l.b16 %v1889
      %v1902 = vunpack.c.l.b16 %v1890
      %v1903 = vpack.c.b16 %v1900, %v1899
      %v1904 = vpack.c.b16 %v1902, %v1901
      %v1908 = vsel %vm1168, %v1886, 0
      %1910 = vmatpush.bf16.msra.mxu0 0
      %1911 = vmatpush.bf16.msra.mxu0 0
      %1912 = vmatpush.bf16.msra.mxu0 0
      %1913 = vmatpush.bf16.msra.mxu0 0
      %1914 = vmatpush.bf16.msra.mxu0 0
      %1915 = vmatpush.bf16.msra.mxu0 0
      %1916 = vmatpush.bf16.msra.mxu0 %v1904
      %1917 = vmatpush.bf16.msra.mxu0 %v1903
      %1918 = vmatmul.bf16.gmra.mxu0 %v1908
      %v1919 = vpop.f32.mrf.mxu0
      %v1920 = vadd.f32 %v1893, %v1919
      %v1921 = vpop.f32.mrf.mxu0
      %1922 = vdwg.mxu0
      %v1923 = vadd.f32 %v1512, %v1920
      %v1924 = vld [vmem:[%s1085] sm:$0x1]
      %v1925 = vld [vmem:[%s1088] sm:$0x1]
      %v1926 = vsel %vm1475, %v1923, 0.0
      %1927 = vadd.xlane.f32.xlu0 %v1926
      %v1928 = vpop.xlane.xlu0 %1927
      %v1929 = vmul.f32 %v1928, %v1485
      %v1930 = vsub.f32 %v1923, %v1929
      %v1931 = vmul.f32 %v1930, %v1930
      %v1932 = vsel %vm1475, %v1931, 0.0
      %1933 = vadd.xlane.f32.xlu0 %v1932
      %v1934 = vpop.xlane.xlu0 %1933
      %v1935 = vmul.f32 %v1934, %v1485
      %v1936 = vadd.f32 %v1935, 1e-05
      %v1937 = vrsqrt.pop %v1936
      %v1938 = vmul.f32 %v1937, %v1936
      %v1939 = vmul.f32 %v1938, %v1937
      %v1940 = vmul.f32 0.5, %v1939
      %v1941 = vsub.f32 1.5, %v1940
      %v1942 = vmul.f32 %v1937, %v1941
      %vm1943 = vweird.f32 %v1936
      %vm1944 = vweird.f32 %v1937
      %vm1945 = vmor %vm1943, %vm1944
      %v1946 = vsel %vm1945, %v1937, %v1942
      %v1947 = vmul.f32 %v1930, %v1946
      %v1949 = vperm.slane %v1924, 0
      %v1951 = vmul.f32 %v1947, %v1949
      %v1953 = vperm.slane %v1925, 0
      %v1955 = vadd.f32 %v1951, %v1953
      %v1956 = vpack.c.bf16 %v1955, %v1955
      %v1957 = vld [vmem:[%s1093] sm:$0xf]
      %v1958 = vld [vmem:[%s1093 + $0x4] sm:$0xf]
      %v1959 = vld [vmem:[%s1093 + $0x8] sm:$0xf]
      %v1960 = vld [vmem:[%s1093 + $0xc] sm:$0xf]
      %v1961 = vld [vmem:[%s1096] sm:$0x1]
      %v1963 = vperm.slane %v1961, 0
      %v1969 = vunpack.c.l.b16 %v1957
      %v1970 = vunpack.c.l.b16 %v1958
      %v1971 = vunpack.c.l.b16 %v1959
      %v1972 = vunpack.c.l.b16 %v1960
      %v1973 = vpack.c.b16 %v1970, %v1969
      %v1974 = vpack.c.b16 %v1972, %v1971
      %v1978 = vsel %vm1168, %v1956, 0
      %1980 = vmatpush.bf16.msra.mxu0 0
      %1981 = vmatpush.bf16.msra.mxu0 0
      %1982 = vmatpush.bf16.msra.mxu0 0
      %1983 = vmatpush.bf16.msra.mxu0 0
      %1984 = vmatpush.bf16.msra.mxu0 0
      %1985 = vmatpush.bf16.msra.mxu0 0
      %1986 = vmatpush.bf16.msra.mxu0 %v1974
      %1987 = vmatpush.bf16.msra.mxu0 %v1973
      %1988 = vmatmul.bf16.gmra.mxu0 %v1978
      %v1989 = vpop.f32.mrf.mxu0
      %v1990 = vadd.f32 %v1963, %v1989
      %v1991 = vpop.f32.mrf.mxu0
      %1992 = vdwg.mxu0
      %v1993 = vmax.f32 %v1990, 0.0
      %v1994 = vpack.c.bf16 %v1993, %v1993
      %v1995 = vld [vmem:[%s1101] sm:$0xf]
      %v1996 = vld [vmem:[%s1101 + $0x4] sm:$0xf]
      %v1997 = vld [vmem:[%s1101 + $0x8] sm:$0xf]
      %v1998 = vld [vmem:[%s1101 + $0xc] sm:$0xf]
      %v1999 = vld [vmem:[%s1101 + $0x10] sm:$0xf]
      %v2000 = vld [vmem:[%s1101 + $0x14] sm:$0xf]
      %v2001 = vld [vmem:[%s1101 + $0x18] sm:$0xf]
      %v2002 = vld [vmem:[%s1101 + $0x1c] sm:$0xf]
      %v2003 = vld [vmem:[%s1104] sm:$0x1]
      %v2005 = vperm.slane %v2003, 0
      %v2015 = vunpack.c.l.b16 %v1995
      %v2016 = vunpack.c.l.b16 %v1996
      %v2017 = vunpack.c.l.b16 %v1997
      %v2018 = vunpack.c.l.b16 %v1998
      %v2019 = vunpack.c.l.b16 %v1999
      %v2020 = vunpack.c.l.b16 %v2000
      %v2021 = vunpack.c.l.b16 %v2001
      %v2022 = vunpack.c.l.b16 %v2002
      %v2023 = vpack.c.b16 %v2016, %v2015
      %v2024 = vpack.c.b16 %v2018, %v2017
      %v2025 = vpack.c.b16 %v2020, %v2019
      %v2026 = vpack.c.b16 %v2022, %v2021
      %vm2031 = vcmask 523264
      %v2033 = vsel %vm2031, %v1994, 0
      %2035 = vmatpush.bf16.msra.mxu0 0
      %2036 = vmatpush.bf16.msra.mxu0 0
      %2037 = vmatpush.bf16.msra.mxu0 0
      %2038 = vmatpush.bf16.msra.mxu0 0
      %2039 = vmatpush.bf16.msra.mxu0 %v2026
      %2040 = vmatpush.bf16.msra.mxu0 %v2025
      %2041 = vmatpush.bf16.msra.mxu0 %v2024
      %2042 = vmatpush.bf16.msra.mxu0 %v2023
      %2043 = vmatmul.bf16.gmra.mxu0 %v2033
      %v2044 = vpop.f32.mrf.mxu0
      %v2045 = vadd.f32 %v2005, %v2044
      %v2046 = vpop.f32.mrf.mxu0
      %2047 = vdwg.mxu0
      %v2048 = vadd.f32 %v1955, %v2045
      %v2049 = vld [vmem:[%s1107] sm:$0x1]
      %v2050 = vld [vmem:[%s1110] sm:$0x1]
      %v2051 = vsel %vm1475, %v2048, 0.0
      %2052 = vadd.xlane.f32.xlu0 %v2051
      %v2053 = vpop.xlane.xlu0 %2052
      %v2054 = vmul.f32 %v2053, %v1485
      %v2055 = vsub.f32 %v2048, %v2054
      %v2056 = vmul.f32 %v2055, %v2055
      %v2057 = vsel %vm1475, %v2056, 0.0
      %2058 = vadd.xlane.f32.xlu0 %v2057
      %v2059 = vpop.xlane.xlu0 %2058
      %v2060 = vmul.f32 %v2059, %v1485
      %v2061 = vadd.f32 %v2060, 1e-05
      %v2062 = vrsqrt.pop %v2061
      %v2063 = vmul.f32 %v2062, %v2061
      %v2064 = vmul.f32 %v2063, %v2062
      %v2065 = vmul.f32 0.5, %v2064
      %v2066 = vsub.f32 1.5, %v2065
      %v2067 = vmul.f32 %v2062, %v2066
      %vm2068 = vweird.f32 %v2061
      %vm2069 = vweird.f32 %v2062
      %vm2070 = vmor %vm2068, %vm2069
      %v2071 = vsel %vm2070, %v2062, %v2067
      %v2072 = vmul.f32 %v2055, %v2071
      %v2074 = vperm.slane %v2049, 0
      %v2076 = vmul.f32 %v2072, %v2074
      %v2078 = vperm.slane %v2050, 0
      %v2080 = vadd.f32 %v2076, %v2078
      %2081 = vst.msk [vmem:[#allocation2] sm:$0x7f] %vm1475, %v2080
      %2082 = vst.msk [vmem:[%s1114] sm:$0x7f] %vm1475, %v2080
      %p2083 = scmp.lt.s32.totalorder %s40, 1
      %s2084 = scalar_select %p2083, %s40, 1
      %s2085 = smul.addr %s2084, 8
      %s2086 = scalar_lea.vmem %s23, %s2085
      %s2087 = smul.u32 4, %s40
      %p2088 = scmp.lt.s32.totalorder %s41, 1
      %s2089 = scalar_select %p2088, %s41, 1
      %p2090 = scmp.lt.s32.totalorder %s2087, 7
      %s2091 = scalar_select %p2090, %s2087, 7
      %s2092 = smul.addr %s2089, 8
      %s2093 = sadd.s32 %s2091, %s2092
      %s2094 = smul.addr %s2093, 8
      %s2095 = scalar_lea.vmem %s24, %s2094
      // Predicated region
      $region117: #{decoder_forward.1} parent=111 // pred_check
        %p2096 = pneg %p664
      $region118: #{decoder_forward.1} parent=111 // pred_check_branch
        %2098 = sbr.rel (%p2096) target = $region120
      $region119: #{decoder_forward.1} parent=111 // pred_region
        _
      $region120: #{decoder_forward.1} parent=111 // pred_fallthru
        _
      // Predicated region
      $region121: #{decoder_forward.1} parent=111 // pred_check
        %p2099 = pneg %p692
      $region122: #{decoder_forward.1} parent=111 // pred_check_branch
        %2101 = sbr.rel (%p2099) target = $region124
      $region123: #{decoder_forward.1} parent=111 // pred_region
        %s2102 = smul.u32 4, %s40
      $region124: #{decoder_forward.1} parent=111 // pred_fallthru
        _
    $region112: #{decoder_forward.1} parent=5 // pred_fallthru
      _
    %p2103 = scmp.le.s32.totalorder 2, %s31
    // Predicated region
    $region125: #{decoder_forward.1} parent=5 // pred_check
      %p2104 = pneg %p2103
    $region126: #{decoder_forward.1} parent=5 // pred_check_branch
      %2106 = sbr.rel (%p2104) target = $region128
    $region127: #{decoder_forward.1} parent=5 // pred_region
      %s2107 = ssub.s32 %s31, 2
      // Predicated region
      $region129: #{decoder_forward.1} parent=127 // pred_check
        %p2108 = pneg %p670
      $region130: #{decoder_forward.1} parent=127 // pred_check_branch
        %2110 = sbr.rel (%p2108) target = $region132
      $region131: #{decoder_forward.1} parent=127 // pred_region
        %p2111 = scmp.lt.s32.totalorder %s42, 1
        %s2112 = scalar_select %p2111, %s42, 1
        %s2113 = smul.addr %s2112, 8
        %s2114 = scalar_lea.vmem %s23, %s2113
      $region132: #{decoder_forward.1} parent=127 // pred_fallthru
        _
      // Predicated region
      $region133: #{decoder_forward.1} parent=127 // pred_check
        %p2115 = pneg %p698
      $region134: #{decoder_forward.1} parent=127 // pred_check_branch
        %2117 = sbr.rel (%p2115) target = $region136
      $region135: #{decoder_forward.1} parent=127 // pred_region
        %s2118 = smul.u32 4, %s42
        %p2119 = scmp.lt.s32.totalorder %s43, 1
        %s2120 = scalar_select %p2119, %s43, 1
        %p2121 = scmp.lt.s32.totalorder %s2118, 7
        %s2122 = scalar_select %p2121, %s2118, 7
        %s2123 = smul.addr %s2120, 8
        %s2124 = sadd.s32 %s2122, %s2123
        %s2125 = smul.addr %s2124, 8
        %s2126 = scalar_lea.vmem %s24, %s2125
      $region136: #{decoder_forward.1} parent=127 // pred_fallthru
        _
    $region128: #{decoder_forward.1} parent=5 // pred_fallthru
      _
  $region6: #{decoder_forward.1} parent=0 // loop_footer
    %s35 = sadd.s32 1, %s31
  $region7: #{decoder_forward.1} parent=0 // loop_footer_branch
    %30 = sbr.rel target = $region3
  $region8: #{decoder_forward.1} parent=0 // loop_exit
    _

</llo_original>
